<compile_context>
chip_gen: v7x
topology: tpu7x:2x2x1
jax: 0.10.0
libtpu: 0.0.40
codegen_flags: <defaults>
</compile_context>

<pallas_src>
import jax
import jax.numpy as jnp
from jax.experimental import pallas as pl
from jax.experimental.pallas import tpu as pltpu

_BLOCK_B = 128          # batch tile (MXU M dimension)
_LANE = 128             # lane-dense feature padding

_P_IN, _P_HID = 0.2, 0.5
_THR_IN = int(_P_IN * (1 << 24))      # drop if r24 < thr, r24 uniform in [0, 2^24)
_THR_HID = int(_P_HID * (1 << 24))
_SCALE_IN = 1.0 / (1.0 - _P_IN)       # inverted-dropout scale
_SCALE_HID = 1.0 / (1.0 - _P_HID)


def _i32c(v):
    """Python uint32 constant -> two's-complement int32 value."""
    v &= 0xFFFFFFFF
    return v - (1 << 32) if v >= (1 << 31) else v


def _srl(x, k):
    """Logical right shift of int32 (arithmetic shift + mask): portable on
    Mosaic and the CPU interpreter."""
    return (x >> k) & jnp.int32((1 << (32 - k)) - 1)


def _random_bits24(shape, row_off, seed, salt):
    """Stateless per-element hash -> 24 uniform random bits (non-negative int32).

    Pure jnp integer ops (wrap-around int32 arithmetic), so it lowers both on
    TPU and under interpret mode. Global (row, col, layer, seed) indexing makes
    the random stream independent of the grid tiling (no reused masks across
    batch tiles).
    """
    rows = jax.lax.broadcasted_iota(jnp.int32, shape, 0) + row_off
    cols = jax.lax.broadcasted_iota(jnp.int32, shape, 1)
    x = (rows * jnp.int32(_i32c(0x9E3779B9))
         + cols * jnp.int32(_i32c(0x85EBCA6B))
         + seed * jnp.int32(_i32c(0xC2B2AE35))
         + jnp.int32((salt * 0x632BE59B) & 0x7FFFFFFF))
    # splitmix32-style finalizer
    x = (x ^ _srl(x, 16)) * jnp.int32(_i32c(0x7FEB352D))
    x = (x ^ _srl(x, 15)) * jnp.int32(_i32c(0x846CA68B))
    x = x ^ _srl(x, 16)
    return _srl(x, 8)


def _dropout(v, thr, scale, seed, row_off, salt):
    """Inverted dropout via integer-threshold compare (no float RNG math)."""
    r = _random_bits24(v.shape, row_off, seed, salt)
    keep = r >= jnp.int32(thr)
    return jnp.where(keep, v * jnp.float32(scale), jnp.zeros_like(v))


def mlp_kernel(seed_ref, x_ref, w1_ref, b1_ref, w2_ref, b2_ref, w3_ref, b3_ref,
               o_ref):
    seed = seed_ref[0]
    row_off = pl.program_id(0) * x_ref.shape[0]   # global row offset of this tile

    # input dropout p=0.2 (mask math in f32/int32)
    h = _dropout(x_ref[...].astype(jnp.float32), _THR_IN, _SCALE_IN,
                 seed, row_off, 1)
    # linear 1 (bf16 MXU operands, f32 accumulation) + dropout p=0.5
    h = jnp.dot(h.astype(jnp.bfloat16), w1_ref[...],
                preferred_element_type=jnp.float32) + b1_ref[...]
    h = _dropout(h, _THR_HID, _SCALE_HID, seed, row_off, 2)
    # linear 2 + dropout p=0.5
    h = jnp.dot(h.astype(jnp.bfloat16), w2_ref[...],
                preferred_element_type=jnp.float32) + b2_ref[...]
    h = _dropout(h, _THR_HID, _SCALE_HID, seed, row_off, 3)
    # output linear
    y = jnp.dot(h.astype(jnp.bfloat16), w3_ref[...],
                preferred_element_type=jnp.float32) + b3_ref[...]
    o_ref[...] = y.astype(o_ref.dtype)


def _pad_to(a, axis, mult):
    pad = (-a.shape[axis]) % mult
    if pad == 0:
        return a
    widths = [(0, 0)] * a.ndim
    widths[axis] = (0, pad)
    return jnp.pad(a, widths)


@jax.jit
def dropout_mlp(seed, x, w1, b1, w2, b2, w3, b3):
    B, _ = x.shape
    n_out = w3.shape[1]

    # Lane-dense padding (feature dims -> multiples of 128) + batch tiling pad.
    xp = _pad_to(_pad_to(x, 1, _LANE), 0, _BLOCK_B)
    w1p = _pad_to(_pad_to(w1, 0, _LANE), 1, _LANE).astype(jnp.bfloat16)
    w2p = _pad_to(_pad_to(w2, 0, _LANE), 1, _LANE).astype(jnp.bfloat16)
    w3p = _pad_to(_pad_to(w3, 0, _LANE), 1, _LANE).astype(jnp.bfloat16)
    b1p = _pad_to(b1, 1, _LANE)
    b2p = _pad_to(b2, 1, _LANE)
    b3p = _pad_to(b3, 1, _LANE)

    Bp, Fin = xp.shape
    H1 = w1p.shape[1]
    H2 = w2p.shape[1]
    Fout = w3p.shape[1]

    out = pl.pallas_call(
        mlp_kernel,
        out_shape=jax.ShapeDtypeStruct((Bp, Fout), jnp.float32),
        grid_spec=pltpu.PrefetchScalarGridSpec(
            num_scalar_prefetch=1,              # seed -> SMEM
            grid=(Bp // _BLOCK_B,),
            in_specs=[
                pl.BlockSpec((_BLOCK_B, Fin), lambda i, s: (i, 0)),  # x tile
                pl.BlockSpec((Fin, H1), lambda i, s: (0, 0)),        # w1 (resident)
                pl.BlockSpec((1, H1), lambda i, s: (0, 0)),          # b1
                pl.BlockSpec((H1, H2), lambda i, s: (0, 0)),         # w2 (resident)
                pl.BlockSpec((1, H2), lambda i, s: (0, 0)),          # b2
                pl.BlockSpec((H2, Fout), lambda i, s: (0, 0)),       # w3 (resident)
                pl.BlockSpec((1, Fout), lambda i, s: (0, 0)),        # b3
            ],
            out_specs=pl.BlockSpec((_BLOCK_B, Fout), lambda i, s: (i, 0)),
        ),
        compiler_params=pltpu.CompilerParams(
            dimension_semantics=("parallel",)),
    )(seed, xp, w1p, b1p, w2p, b2p, w3p, b3p)
    return out[:B, :n_out]


def init_linear(key, fan_in, fan_out):
    """Mimics torch.nn.Linear default init: U(-k, k) with k = 1/sqrt(fan_in).
    Weights stored [in, out] (transpose of PyTorch) so the kernel does x @ W + b."""
    kw, kb = jax.random.split(key)
    k = 1.0 / jnp.sqrt(jnp.float32(fan_in))
    w = jax.random.uniform(kw, (fan_in, fan_out), jnp.float32, -k, k)
    b = jax.random.uniform(kb, (1, fan_out), jnp.float32, -k, k)
    return w, b


if __name__ == "__main__":
    # Small shapes consistent with the module: batch=8, n_in=32, n_hidden=128, n_out=16
    B, n_in, n_hidden, n_out = 8, 32, 128, 16

    root = jax.random.PRNGKey(0)
    kx, k1, k2, k3 = jax.random.split(root, 4)

    x = jax.random.normal(kx, (B, n_in), jnp.float32)
    w1, b1 = init_linear(k1, n_in, n_hidden)
    w2, b2 = init_linear(k2, n_hidden, n_hidden)
    w3, b3 = init_linear(k3, n_hidden, n_out)

    seed = jnp.array([0], dtype=jnp.int32)   # dropout RNG seed

    y = dropout_mlp(seed, x, w1, b1, w2, b2, w3, b3)
    jax.block_until_ready(y)
    assert y.shape == (B, n_out) and y.dtype == jnp.float32
    assert bool(jnp.all(jnp.isfinite(y)))
    print("KERNEL_OK")
</pallas_src>

<mosaic_0001>
module attributes {stable_mosaic.version = 11 : i64} {
  func.func @mlp_kernel(%arg0: i32, %arg1: memref<1xi32, #tpu.memory_space<smem>>, %arg2: memref<128x128xf32, #tpu.memory_space<vmem>>, %arg3: memref<128x128xbf16, #tpu.memory_space<vmem>>, %arg4: memref<1x128xf32, #tpu.memory_space<vmem>>, %arg5: memref<128x128xbf16, #tpu.memory_space<vmem>>, %arg6: memref<1x128xf32, #tpu.memory_space<vmem>>, %arg7: memref<128x128xbf16, #tpu.memory_space<vmem>>, %arg8: memref<1x128xf32, #tpu.memory_space<vmem>>, %arg9: memref<128x128xf32, #tpu.memory_space<vmem>>) attributes {dimension_semantics = [#tpu.dimension_semantics<parallel>], iteration_bounds = array<i64: 1>, scalar_prefetch = 1 : i64, scratch_operands = 0 : i64, tpu.core_type = #tpu.core_type<tc>, window_params = [{transform_indices = @transform_0, window_bounds = array<i64: 128, 128>}, {pipeline_mode = #tpu.pipeline_mode<synchronous>, transform_indices = @transform_1, window_bounds = array<i64: 128, 128>}, {pipeline_mode = #tpu.pipeline_mode<synchronous>, transform_indices = @transform_2, window_bounds = array<i64: 1, 128>}, {pipeline_mode = #tpu.pipeline_mode<synchronous>, transform_indices = @transform_3, window_bounds = array<i64: 128, 128>}, {pipeline_mode = #tpu.pipeline_mode<synchronous>, transform_indices = @transform_4, window_bounds = array<i64: 1, 128>}, {pipeline_mode = #tpu.pipeline_mode<synchronous>, transform_indices = @transform_5, window_bounds = array<i64: 128, 128>}, {pipeline_mode = #tpu.pipeline_mode<synchronous>, transform_indices = @transform_6, window_bounds = array<i64: 1, 128>}, {transform_indices = @transform_7, window_bounds = array<i64: 128, 128>}]} {
    %c0 = arith.constant 0 : index
    %0 = memref.load %arg1[%c0] : memref<1xi32, #tpu.memory_space<smem>>
    %c128_i32 = arith.constant 128 : i32
    %1 = arith.muli %arg0, %c128_i32 : i32
    %c0_0 = arith.constant 0 : index
    %c0_1 = arith.constant 0 : index
    %2 = vector.load %arg2[%c0_0, %c0_1] : memref<128x128xf32, #tpu.memory_space<vmem>>, vector<128x128xf32>
    %3 = tpu.iota {dimensions = array<i32: 0>} : vector<128x128xi32>
    %4 = vector.broadcast %1 : i32 to vector<128x128xi32>
    %5 = arith.addi %3, %4 : vector<128x128xi32>
    %6 = tpu.iota {dimensions = array<i32: 1>} : vector<128x128xi32>
    %c-1640531527_i32 = arith.constant -1640531527 : i32
    %7 = vector.broadcast %c-1640531527_i32 : i32 to vector<128x128xi32>
    %8 = arith.muli %5, %7 : vector<128x128xi32>
    %c-2048144789_i32 = arith.constant -2048144789 : i32
    %9 = vector.broadcast %c-2048144789_i32 : i32 to vector<128x128xi32>
    %10 = arith.muli %6, %9 : vector<128x128xi32>
    %11 = arith.addi %8, %10 : vector<128x128xi32>
    %c-1028477387_i32 = arith.constant -1028477387 : i32
    %12 = arith.muli %0, %c-1028477387_i32 : i32
    %13 = vector.broadcast %12 : i32 to vector<128x128xi32>
    %14 = arith.addi %11, %13 : vector<128x128xi32>
    %c1663821211_i32 = arith.constant 1663821211 : i32
    %15 = vector.broadcast %c1663821211_i32 : i32 to vector<128x128xi32>
    %16 = arith.addi %14, %15 : vector<128x128xi32>
    %c16_i32 = arith.constant 16 : i32
    %17 = vector.broadcast %c16_i32 : i32 to vector<128x128xi32>
    %18 = arith.shrsi %16, %17 : vector<128x128xi32>
    %c65535_i32 = arith.constant 65535 : i32
    %19 = vector.broadcast %c65535_i32 : i32 to vector<128x128xi32>
    %20 = arith.andi %18, %19 : vector<128x128xi32>
    %21 = arith.xori %16, %20 : vector<128x128xi32>
    %c2146121005_i32 = arith.constant 2146121005 : i32
    %22 = vector.broadcast %c2146121005_i32 : i32 to vector<128x128xi32>
    %23 = arith.muli %21, %22 : vector<128x128xi32>
    %c15_i32 = arith.constant 15 : i32
    %24 = vector.broadcast %c15_i32 : i32 to vector<128x128xi32>
    %25 = arith.shrsi %23, %24 : vector<128x128xi32>
    %c131071_i32 = arith.constant 131071 : i32
    %26 = vector.broadcast %c131071_i32 : i32 to vector<128x128xi32>
    %27 = arith.andi %25, %26 : vector<128x128xi32>
    %28 = arith.xori %23, %27 : vector<128x128xi32>
    %c-2073254261_i32 = arith.constant -2073254261 : i32
    %29 = vector.broadcast %c-2073254261_i32 : i32 to vector<128x128xi32>
    %30 = arith.muli %28, %29 : vector<128x128xi32>
    %c16_i32_2 = arith.constant 16 : i32
    %31 = vector.broadcast %c16_i32_2 : i32 to vector<128x128xi32>
    %32 = arith.shrsi %30, %31 : vector<128x128xi32>
    %c65535_i32_3 = arith.constant 65535 : i32
    %33 = vector.broadcast %c65535_i32_3 : i32 to vector<128x128xi32>
    %34 = arith.andi %32, %33 : vector<128x128xi32>
    %35 = arith.xori %30, %34 : vector<128x128xi32>
    %c8_i32 = arith.constant 8 : i32
    %36 = vector.broadcast %c8_i32 : i32 to vector<128x128xi32>
    %37 = arith.shrsi %35, %36 : vector<128x128xi32>
    %c16777215_i32 = arith.constant 16777215 : i32
    %38 = vector.broadcast %c16777215_i32 : i32 to vector<128x128xi32>
    %39 = arith.andi %37, %38 : vector<128x128xi32>
    %c3355443_i32 = arith.constant 3355443 : i32
    %40 = vector.broadcast %c3355443_i32 : i32 to vector<128x128xi32>
    %41 = arith.cmpi sge, %39, %40 : vector<128x128xi32>
    %cst = arith.constant 1.250000e+00 : f32
    %42 = vector.broadcast %cst : f32 to vector<128x128xf32>
    %43 = arith.mulf %2, %42 : vector<128x128xf32>
    %cst_4 = arith.constant 0.000000e+00 : f32
    %44 = vector.broadcast %cst_4 : f32 to vector<128x128xf32>
    %45 = arith.select %41, %43, %44 : vector<128x128xi1>, vector<128x128xf32>
    %46 = arith.truncf %45 : vector<128x128xf32> to vector<128x128xbf16>
    %c0_5 = arith.constant 0 : index
    %c0_6 = arith.constant 0 : index
    %47 = vector.load %arg3[%c0_5, %c0_6] : memref<128x128xbf16, #tpu.memory_space<vmem>>, vector<128x128xbf16>
    %cst_7 = arith.constant dense<0.000000e+00> : vector<128x128xf32>
    %48 = tpu.matmul %46, %47, %cst_7 {dimension_numbers = #tpu.dot_dimension_numbers<[1], [0], [0], [1], [0, 0, 1, 1], [], []>} : vector<128x128xbf16>, vector<128x128xbf16>, vector<128x128xf32> -> vector<128x128xf32>
    %c0_8 = arith.constant 0 : index
    %c0_9 = arith.constant 0 : index
    %49 = vector.load %arg4[%c0_8, %c0_9] : memref<1x128xf32, #tpu.memory_space<vmem>>, vector<1x128xf32>
    %50 = vector.broadcast %49 : vector<1x128xf32> to vector<128x128xf32>
    %51 = arith.addf %48, %50 : vector<128x128xf32>
    %52 = tpu.iota {dimensions = array<i32: 0>} : vector<128x128xi32>
    %53 = vector.broadcast %1 : i32 to vector<128x128xi32>
    %54 = arith.addi %52, %53 : vector<128x128xi32>
    %55 = tpu.iota {dimensions = array<i32: 1>} : vector<128x128xi32>
    %c-1640531527_i32_10 = arith.constant -1640531527 : i32
    %56 = vector.broadcast %c-1640531527_i32_10 : i32 to vector<128x128xi32>
    %57 = arith.muli %54, %56 : vector<128x128xi32>
    %c-2048144789_i32_11 = arith.constant -2048144789 : i32
    %58 = vector.broadcast %c-2048144789_i32_11 : i32 to vector<128x128xi32>
    %59 = arith.muli %55, %58 : vector<128x128xi32>
    %60 = arith.addi %57, %59 : vector<128x128xi32>
    %c-1028477387_i32_12 = arith.constant -1028477387 : i32
    %61 = arith.muli %0, %c-1028477387_i32_12 : i32
    %62 = vector.broadcast %61 : i32 to vector<128x128xi32>
    %63 = arith.addi %60, %62 : vector<128x128xi32>
    %c1180158774_i32 = arith.constant 1180158774 : i32
    %64 = vector.broadcast %c1180158774_i32 : i32 to vector<128x128xi32>
    %65 = arith.addi %63, %64 : vector<128x128xi32>
    %c16_i32_13 = arith.constant 16 : i32
    %66 = vector.broadcast %c16_i32_13 : i32 to vector<128x128xi32>
    %67 = arith.shrsi %65, %66 : vector<128x128xi32>
    %c65535_i32_14 = arith.constant 65535 : i32
    %68 = vector.broadcast %c65535_i32_14 : i32 to vector<128x128xi32>
    %69 = arith.andi %67, %68 : vector<128x128xi32>
    %70 = arith.xori %65, %69 : vector<128x128xi32>
    %c2146121005_i32_15 = arith.constant 2146121005 : i32
    %71 = vector.broadcast %c2146121005_i32_15 : i32 to vector<128x128xi32>
    %72 = arith.muli %70, %71 : vector<128x128xi32>
    %c15_i32_16 = arith.constant 15 : i32
    %73 = vector.broadcast %c15_i32_16 : i32 to vector<128x128xi32>
    %74 = arith.shrsi %72, %73 : vector<128x128xi32>
    %c131071_i32_17 = arith.constant 131071 : i32
    %75 = vector.broadcast %c131071_i32_17 : i32 to vector<128x128xi32>
    %76 = arith.andi %74, %75 : vector<128x128xi32>
    %77 = arith.xori %72, %76 : vector<128x128xi32>
    %c-2073254261_i32_18 = arith.constant -2073254261 : i32
    %78 = vector.broadcast %c-2073254261_i32_18 : i32 to vector<128x128xi32>
    %79 = arith.muli %77, %78 : vector<128x128xi32>
    %c16_i32_19 = arith.constant 16 : i32
    %80 = vector.broadcast %c16_i32_19 : i32 to vector<128x128xi32>
    %81 = arith.shrsi %79, %80 : vector<128x128xi32>
    %c65535_i32_20 = arith.constant 65535 : i32
    %82 = vector.broadcast %c65535_i32_20 : i32 to vector<128x128xi32>
    %83 = arith.andi %81, %82 : vector<128x128xi32>
    %84 = arith.xori %79, %83 : vector<128x128xi32>
    %c8_i32_21 = arith.constant 8 : i32
    %85 = vector.broadcast %c8_i32_21 : i32 to vector<128x128xi32>
    %86 = arith.shrsi %84, %85 : vector<128x128xi32>
    %c16777215_i32_22 = arith.constant 16777215 : i32
    %87 = vector.broadcast %c16777215_i32_22 : i32 to vector<128x128xi32>
    %88 = arith.andi %86, %87 : vector<128x128xi32>
    %c8388608_i32 = arith.constant 8388608 : i32
    %89 = vector.broadcast %c8388608_i32 : i32 to vector<128x128xi32>
    %90 = arith.cmpi sge, %88, %89 : vector<128x128xi32>
    %cst_23 = arith.constant 2.000000e+00 : f32
    %91 = vector.broadcast %cst_23 : f32 to vector<128x128xf32>
    %92 = arith.mulf %51, %91 : vector<128x128xf32>
    %cst_24 = arith.constant 0.000000e+00 : f32
    %93 = vector.broadcast %cst_24 : f32 to vector<128x128xf32>
    %94 = arith.select %90, %92, %93 : vector<128x128xi1>, vector<128x128xf32>
    %95 = arith.truncf %94 : vector<128x128xf32> to vector<128x128xbf16>
    %c0_25 = arith.constant 0 : index
    %c0_26 = arith.constant 0 : index
    %96 = vector.load %arg5[%c0_25, %c0_26] : memref<128x128xbf16, #tpu.memory_space<vmem>>, vector<128x128xbf16>
    %cst_27 = arith.constant dense<0.000000e+00> : vector<128x128xf32>
    %97 = tpu.matmul %95, %96, %cst_27 {dimension_numbers = #tpu.dot_dimension_numbers<[1], [0], [0], [1], [0, 0, 1, 1], [], []>} : vector<128x128xbf16>, vector<128x128xbf16>, vector<128x128xf32> -> vector<128x128xf32>
    %c0_28 = arith.constant 0 : index
    %c0_29 = arith.constant 0 : index
    %98 = vector.load %arg6[%c0_28, %c0_29] : memref<1x128xf32, #tpu.memory_space<vmem>>, vector<1x128xf32>
    %99 = vector.broadcast %98 : vector<1x128xf32> to vector<128x128xf32>
    %100 = arith.addf %97, %99 : vector<128x128xf32>
    %101 = tpu.iota {dimensions = array<i32: 0>} : vector<128x128xi32>
    %102 = vector.broadcast %1 : i32 to vector<128x128xi32>
    %103 = arith.addi %101, %102 : vector<128x128xi32>
    %104 = tpu.iota {dimensions = array<i32: 1>} : vector<128x128xi32>
    %c-1640531527_i32_30 = arith.constant -1640531527 : i32
    %105 = vector.broadcast %c-1640531527_i32_30 : i32 to vector<128x128xi32>
    %106 = arith.muli %103, %105 : vector<128x128xi32>
    %c-2048144789_i32_31 = arith.constant -2048144789 : i32
    %107 = vector.broadcast %c-2048144789_i32_31 : i32 to vector<128x128xi32>
    %108 = arith.muli %104, %107 : vector<128x128xi32>
    %109 = arith.addi %106, %108 : vector<128x128xi32>
    %c-1028477387_i32_32 = arith.constant -1028477387 : i32
    %110 = arith.muli %0, %c-1028477387_i32_32 : i32
    %111 = vector.broadcast %110 : i32 to vector<128x128xi32>
    %112 = arith.addi %109, %111 : vector<128x128xi32>
    %c696496337_i32 = arith.constant 696496337 : i32
    %113 = vector.broadcast %c696496337_i32 : i32 to vector<128x128xi32>
    %114 = arith.addi %112, %113 : vector<128x128xi32>
    %c16_i32_33 = arith.constant 16 : i32
    %115 = vector.broadcast %c16_i32_33 : i32 to vector<128x128xi32>
    %116 = arith.shrsi %114, %115 : vector<128x128xi32>
    %c65535_i32_34 = arith.constant 65535 : i32
    %117 = vector.broadcast %c65535_i32_34 : i32 to vector<128x128xi32>
    %118 = arith.andi %116, %117 : vector<128x128xi32>
    %119 = arith.xori %114, %118 : vector<128x128xi32>
    %c2146121005_i32_35 = arith.constant 2146121005 : i32
    %120 = vector.broadcast %c2146121005_i32_35 : i32 to vector<128x128xi32>
    %121 = arith.muli %119, %120 : vector<128x128xi32>
    %c15_i32_36 = arith.constant 15 : i32
    %122 = vector.broadcast %c15_i32_36 : i32 to vector<128x128xi32>
    %123 = arith.shrsi %121, %122 : vector<128x128xi32>
    %c131071_i32_37 = arith.constant 131071 : i32
    %124 = vector.broadcast %c131071_i32_37 : i32 to vector<128x128xi32>
    %125 = arith.andi %123, %124 : vector<128x128xi32>
    %126 = arith.xori %121, %125 : vector<128x128xi32>
    %c-2073254261_i32_38 = arith.constant -2073254261 : i32
    %127 = vector.broadcast %c-2073254261_i32_38 : i32 to vector<128x128xi32>
    %128 = arith.muli %126, %127 : vector<128x128xi32>
    %c16_i32_39 = arith.constant 16 : i32
    %129 = vector.broadcast %c16_i32_39 : i32 to vector<128x128xi32>
    %130 = arith.shrsi %128, %129 : vector<128x128xi32>
    %c65535_i32_40 = arith.constant 65535 : i32
    %131 = vector.broadcast %c65535_i32_40 : i32 to vector<128x128xi32>
    %132 = arith.andi %130, %131 : vector<128x128xi32>
    %133 = arith.xori %128, %132 : vector<128x128xi32>
    %c8_i32_41 = arith.constant 8 : i32
    %134 = vector.broadcast %c8_i32_41 : i32 to vector<128x128xi32>
    %135 = arith.shrsi %133, %134 : vector<128x128xi32>
    %c16777215_i32_42 = arith.constant 16777215 : i32
    %136 = vector.broadcast %c16777215_i32_42 : i32 to vector<128x128xi32>
    %137 = arith.andi %135, %136 : vector<128x128xi32>
    %c8388608_i32_43 = arith.constant 8388608 : i32
    %138 = vector.broadcast %c8388608_i32_43 : i32 to vector<128x128xi32>
    %139 = arith.cmpi sge, %137, %138 : vector<128x128xi32>
    %cst_44 = arith.constant 2.000000e+00 : f32
    %140 = vector.broadcast %cst_44 : f32 to vector<128x128xf32>
    %141 = arith.mulf %100, %140 : vector<128x128xf32>
    %cst_45 = arith.constant 0.000000e+00 : f32
    %142 = vector.broadcast %cst_45 : f32 to vector<128x128xf32>
    %143 = arith.select %139, %141, %142 : vector<128x128xi1>, vector<128x128xf32>
    %144 = arith.truncf %143 : vector<128x128xf32> to vector<128x128xbf16>
    %c0_46 = arith.constant 0 : index
    %c0_47 = arith.constant 0 : index
    %145 = vector.load %arg7[%c0_46, %c0_47] : memref<128x128xbf16, #tpu.memory_space<vmem>>, vector<128x128xbf16>
    %cst_48 = arith.constant dense<0.000000e+00> : vector<128x128xf32>
    %146 = tpu.matmul %144, %145, %cst_48 {dimension_numbers = #tpu.dot_dimension_numbers<[1], [0], [0], [1], [0, 0, 1, 1], [], []>} : vector<128x128xbf16>, vector<128x128xbf16>, vector<128x128xf32> -> vector<128x128xf32>
    %c0_49 = arith.constant 0 : index
    %c0_50 = arith.constant 0 : index
    %147 = vector.load %arg8[%c0_49, %c0_50] : memref<1x128xf32, #tpu.memory_space<vmem>>, vector<1x128xf32>
    %148 = vector.broadcast %147 : vector<1x128xf32> to vector<128x128xf32>
    %149 = arith.addf %146, %148 : vector<128x128xf32>
    %c0_51 = arith.constant 0 : index
    %c0_52 = arith.constant 0 : index
    %150 = vector.load %arg9[%c0_51, %c0_52] : memref<128x128xf32, #tpu.memory_space<vmem>>, vector<128x128xf32>
    tpu.vector_store %arg9[%c0_51, %c0_52], %149 {strides = array<i32>} : memref<128x128xf32, #tpu.memory_space<vmem>>, vector<128x128xf32>,
    return
  }
  func.func @transform_0(%arg0: i32, %arg1: memref<1xi32, #tpu.memory_space<smem>>) -> (i32, i32) {
    %c0_i32 = arith.constant 0 : i32
    %c0_i32_0 = arith.constant 0 : i32
    return %arg0, %c0_i32 : i32, i32
  }
  func.func @transform_1(%arg0: i32, %arg1: memref<1xi32, #tpu.memory_space<smem>>) -> (i32, i32) {
    %c0_i32 = arith.constant 0 : i32
    %c0_i32_0 = arith.constant 0 : i32
    %c0_i32_1 = arith.constant 0 : i32
    return %c0_i32, %c0_i32_0 : i32, i32
  }
  func.func @transform_2(%arg0: i32, %arg1: memref<1xi32, #tpu.memory_space<smem>>) -> (i32, i32) {
    %c0_i32 = arith.constant 0 : i32
    %c0_i32_0 = arith.constant 0 : i32
    %c0_i32_1 = arith.constant 0 : i32
    return %c0_i32, %c0_i32_0 : i32, i32
  }
  func.func @transform_3(%arg0: i32, %arg1: memref<1xi32, #tpu.memory_space<smem>>) -> (i32, i32) {
    %c0_i32 = arith.constant 0 : i32
    %c0_i32_0 = arith.constant 0 : i32
    %c0_i32_1 = arith.constant 0 : i32
    return %c0_i32, %c0_i32_0 : i32, i32
  }
  func.func @transform_4(%arg0: i32, %arg1: memref<1xi32, #tpu.memory_space<smem>>) -> (i32, i32) {
    %c0_i32 = arith.constant 0 : i32
    %c0_i32_0 = arith.constant 0 : i32
    %c0_i32_1 = arith.constant 0 : i32
    return %c0_i32, %c0_i32_0 : i32, i32
  }
  func.func @transform_5(%arg0: i32, %arg1: memref<1xi32, #tpu.memory_space<smem>>) -> (i32, i32) {
    %c0_i32 = arith.constant 0 : i32
    %c0_i32_0 = arith.constant 0 : i32
    %c0_i32_1 = arith.constant 0 : i32
    return %c0_i32, %c0_i32_0 : i32, i32
  }
  func.func @transform_6(%arg0: i32, %arg1: memref<1xi32, #tpu.memory_space<smem>>) -> (i32, i32) {
    %c0_i32 = arith.constant 0 : i32
    %c0_i32_0 = arith.constant 0 : i32
    %c0_i32_1 = arith.constant 0 : i32
    return %c0_i32, %c0_i32_0 : i32, i32
  }
  func.func @transform_7(%arg0: i32, %arg1: memref<1xi32, #tpu.memory_space<smem>>) -> (i32, i32) {
    %c0_i32 = arith.constant 0 : i32
    %c0_i32_0 = arith.constant 0 : i32
    return %arg0, %c0_i32 : i32, i32
  }
}

</mosaic_0001>

<llo_original>
// kernel: dropout_mlp.1
$region0: #{dropout_mlp.1}
  #allocation0 [shape = 'u32[]', space=smem, size = 0x4, offset = 0x4, fixed_abs, tag = 'smem constant byte address 0x4 - core index']
  #allocation1 [shape = 'u32[144,128]{1,0:T(1,128)}', space=vmem, size = 0x12000, scoped, tag = 'internal scratch']
  #allocation2 [shape = 's32[1]{0}', space=sflag, size = 0x4, scoped, tag = 'scoped memory for dropout_mlp.1']
  #allocation3 [shape = 's32[1]{0:T(128)S(6)}', space=smem, size = 0x200, scoped, tag = 'prefetched SMEM operand 0']
  %s0 = inlined_call_operand.<no memory space> [shape: s32[1], index: 0, kind: input, shape index: {}]
  %s1 = inlined_call_operand.vmem [shape: f32[128,128], index: 1, kind: input, shape index: {}]
  %s2 = inlined_call_operand.vmem [shape: bf16[128,128], index: 2, kind: input, shape index: {}]
  %s3 = inlined_call_operand.vmem [shape: f32[1,128], index: 3, kind: input, shape index: {}]
  %s4 = inlined_call_operand.vmem [shape: bf16[128,128], index: 4, kind: input, shape index: {}]
  %s5 = inlined_call_operand.vmem [shape: f32[1,128], index: 5, kind: input, shape index: {}]
  %s6 = inlined_call_operand.vmem [shape: bf16[128,128], index: 6, kind: input, shape index: {}]
  %s7 = inlined_call_operand.vmem [shape: f32[1,128], index: 7, kind: input, shape index: {}]
  %s8 = inlined_call_operand.vmem [shape: f32[128,128], index: 8, kind: output, shape index: {}]
  %s9 = sld [smem:[#allocation0]]
  $region38: #{dropout_mlp.1} parent=0
    _
  %s11 = ssub.s32 1, %s9
  %s12 = scalar_select 0, %s11, %s9
  %13 = sst [smem:[#allocation3]] %s0
  // Predicated region
  $region2: #{dropout_mlp.1} parent=0 // pred_check
    _
  $region3: #{dropout_mlp.1} parent=0 // pred_check_branch
    %15 = sbr.rel (0) target = $region5
  $region4: #{dropout_mlp.1} parent=0 // pred_region
    _
  $region5: #{dropout_mlp.1} parent=0 // pred_fallthru
    _
  // Predicated region
  $region6: #{dropout_mlp.1} parent=0 // pred_check
    _
  $region7: #{dropout_mlp.1} parent=0 // pred_check_branch
    %17 = sbr.rel (0) target = $region9
  $region8: #{dropout_mlp.1} parent=0 // pred_region
    _
  $region9: #{dropout_mlp.1} parent=0 // pred_fallthru
    _
  // Predicated region
  $region10: #{dropout_mlp.1} parent=0 // pred_check
    _
  $region11: #{dropout_mlp.1} parent=0 // pred_check_branch
    %19 = sbr.rel (0) target = $region13
  $region12: #{dropout_mlp.1} parent=0 // pred_region
    _
  $region13: #{dropout_mlp.1} parent=0 // pred_fallthru
    _
  // Predicated region
  $region14: #{dropout_mlp.1} parent=0 // pred_check
    _
  $region15: #{dropout_mlp.1} parent=0 // pred_check_branch
    %21 = sbr.rel (0) target = $region17
  $region16: #{dropout_mlp.1} parent=0 // pred_region
    _
  $region17: #{dropout_mlp.1} parent=0 // pred_fallthru
    _
  // Predicated region
  $region18: #{dropout_mlp.1} parent=0 // pred_check
    _
  $region19: #{dropout_mlp.1} parent=0 // pred_check_branch
    %23 = sbr.rel (0) target = $region21
  $region20: #{dropout_mlp.1} parent=0 // pred_region
    _
  $region21: #{dropout_mlp.1} parent=0 // pred_fallthru
    _
  // Predicated region
  $region22: #{dropout_mlp.1} parent=0 // pred_check
    _
  $region23: #{dropout_mlp.1} parent=0 // pred_check_branch
    %25 = sbr.rel (0) target = $region25
  $region24: #{dropout_mlp.1} parent=0 // pred_region
    _
  $region25: #{dropout_mlp.1} parent=0 // pred_fallthru
    _
  // Predicated region
  $region26: #{dropout_mlp.1} parent=0 // pred_check
    _
  $region27: #{dropout_mlp.1} parent=0 // pred_check_branch
    %27 = sbr.rel (0) target = $region29
  $region28: #{dropout_mlp.1} parent=0 // pred_region
    _
  $region29: #{dropout_mlp.1} parent=0 // pred_fallthru
    _
  %s29 = sld [smem:[#allocation3]]
  %s30 = smul.u32 0, 128
  %v31 = vld [vmem:[%s1] sm:$0xff]
  %v32 = vld [vmem:[%s1 + $0x8] sm:$0xff]
  %v33 = vld [vmem:[%s1 + $0x10] sm:$0xff]
  %v34 = vld [vmem:[%s1 + $0x18] sm:$0xff]
  %v35 = vld [vmem:[%s1 + $0x20] sm:$0xff]
  %v36 = vld [vmem:[%s1 + $0x28] sm:$0xff]
  %v37 = vld [vmem:[%s1 + $0x30] sm:$0xff]
  %v38 = vld [vmem:[%s1 + $0x38] sm:$0xff]
  %v39 = vld [vmem:[%s1 + $0x40] sm:$0xff]
  %v40 = vld [vmem:[%s1 + $0x48] sm:$0xff]
  %v41 = vld [vmem:[%s1 + $0x50] sm:$0xff]
  %v42 = vld [vmem:[%s1 + $0x58] sm:$0xff]
  %v43 = vld [vmem:[%s1 + $0x60] sm:$0xff]
  %v44 = vld [vmem:[%s1 + $0x68] sm:$0xff]
  %v45 = vld [vmem:[%s1 + $0x70] sm:$0xff]
  %v46 = vld [vmem:[%s1 + $0x78] sm:$0xff]
  %v47 = vlaneseq
  %v48 = vshrl.u32 %v47, 7
  %v49 = vadd.s32 %v48, 8
  %v50 = vadd.s32 %v48, 16
  %v51 = vadd.s32 %v48, 24
  %v52 = vadd.s32 %v48, 32
  %v53 = vadd.s32 %v48, 40
  %v54 = vadd.s32 %v48, 48
  %v55 = vadd.s32 %v48, 56
  %v56 = vadd.s32 %v48, 64
  %v57 = vadd.s32 %v48, 72
  %v58 = vadd.s32 %v48, 80
  %v59 = vadd.s32 %v48, 88
  %v60 = vadd.s32 %v48, 96
  %v61 = vadd.s32 %v48, 104
  %v62 = vadd.s32 %v48, 112
  %v63 = vadd.s32 %v48, 120
  %v64 = vstv %s30
  %v65 = vadd.s32 %v48, %v64
  %v66 = vadd.s32 %v49, %v64
  %v67 = vadd.s32 %v50, %v64
  %v68 = vadd.s32 %v51, %v64
  %v69 = vadd.s32 %v52, %v64
  %v70 = vadd.s32 %v53, %v64
  %v71 = vadd.s32 %v54, %v64
  %v72 = vadd.s32 %v55, %v64
  %v73 = vadd.s32 %v56, %v64
  %v74 = vadd.s32 %v57, %v64
  %v75 = vadd.s32 %v58, %v64
  %v76 = vadd.s32 %v59, %v64
  %v77 = vadd.s32 %v60, %v64
  %v78 = vadd.s32 %v61, %v64
  %v79 = vadd.s32 %v62, %v64
  %v80 = vadd.s32 %v63, %v64
  %v81 = vlaneseq
  %v82 = vand.u32 %v81, 127
  %v83 = vmul.u32 %v65, 2654435769
  %v84 = vmul.u32 %v66, 2654435769
  %v85 = vmul.u32 %v67, 2654435769
  %v86 = vmul.u32 %v68, 2654435769
  %v87 = vmul.u32 %v69, 2654435769
  %v88 = vmul.u32 %v70, 2654435769
  %v89 = vmul.u32 %v71, 2654435769
  %v90 = vmul.u32 %v72, 2654435769
  %v91 = vmul.u32 %v73, 2654435769
  %v92 = vmul.u32 %v74, 2654435769
  %v93 = vmul.u32 %v75, 2654435769
  %v94 = vmul.u32 %v76, 2654435769
  %v95 = vmul.u32 %v77, 2654435769
  %v96 = vmul.u32 %v78, 2654435769
  %v97 = vmul.u32 %v79, 2654435769
  %v98 = vmul.u32 %v80, 2654435769
  %v99 = vmul.u32 %v82, 2246822507
  %v100 = vadd.s32 %v83, %v99
  %v101 = vadd.s32 %v84, %v99
  %v102 = vadd.s32 %v85, %v99
  %v103 = vadd.s32 %v86, %v99
  %v104 = vadd.s32 %v87, %v99
  %v105 = vadd.s32 %v88, %v99
  %v106 = vadd.s32 %v89, %v99
  %v107 = vadd.s32 %v90, %v99
  %v108 = vadd.s32 %v91, %v99
  %v109 = vadd.s32 %v92, %v99
  %v110 = vadd.s32 %v93, %v99
  %v111 = vadd.s32 %v94, %v99
  %v112 = vadd.s32 %v95, %v99
  %v113 = vadd.s32 %v96, %v99
  %v114 = vadd.s32 %v97, %v99
  %v115 = vadd.s32 %v98, %v99
  %s116 = smul.u32 %s29, 3266489909
  %v117 = vstv %s116
  %v118 = vadd.s32 %v100, %v117
  %v119 = vadd.s32 %v101, %v117
  %v120 = vadd.s32 %v102, %v117
  %v121 = vadd.s32 %v103, %v117
  %v122 = vadd.s32 %v104, %v117
  %v123 = vadd.s32 %v105, %v117
  %v124 = vadd.s32 %v106, %v117
  %v125 = vadd.s32 %v107, %v117
  %v126 = vadd.s32 %v108, %v117
  %v127 = vadd.s32 %v109, %v117
  %v128 = vadd.s32 %v110, %v117
  %v129 = vadd.s32 %v111, %v117
  %v130 = vadd.s32 %v112, %v117
  %v131 = vadd.s32 %v113, %v117
  %v132 = vadd.s32 %v114, %v117
  %v133 = vadd.s32 %v115, %v117
  %v134 = vadd.s32 %v118, 1663821211
  %v135 = vadd.s32 %v119, 1663821211
  %v136 = vadd.s32 %v120, 1663821211
  %v137 = vadd.s32 %v121, 1663821211
  %v138 = vadd.s32 %v122, 1663821211
  %v139 = vadd.s32 %v123, 1663821211
  %v140 = vadd.s32 %v124, 1663821211
  %v141 = vadd.s32 %v125, 1663821211
  %v142 = vadd.s32 %v126, 1663821211
  %v143 = vadd.s32 %v127, 1663821211
  %v144 = vadd.s32 %v128, 1663821211
  %v145 = vadd.s32 %v129, 1663821211
  %v146 = vadd.s32 %v130, 1663821211
  %v147 = vadd.s32 %v131, 1663821211
  %v148 = vadd.s32 %v132, 1663821211
  %v149 = vadd.s32 %v133, 1663821211
  %v150 = vshra.s32 %v134, 16
  %v151 = vshra.s32 %v135, 16
  %v152 = vshra.s32 %v136, 16
  %v153 = vshra.s32 %v137, 16
  %v154 = vshra.s32 %v138, 16
  %v155 = vshra.s32 %v139, 16
  %v156 = vshra.s32 %v140, 16
  %v157 = vshra.s32 %v141, 16
  %v158 = vshra.s32 %v142, 16
  %v159 = vshra.s32 %v143, 16
  %v160 = vshra.s32 %v144, 16
  %v161 = vshra.s32 %v145, 16
  %v162 = vshra.s32 %v146, 16
  %v163 = vshra.s32 %v147, 16
  %v164 = vshra.s32 %v148, 16
  %v165 = vshra.s32 %v149, 16
  %v166 = vand.u32 %v150, 65535
  %v167 = vand.u32 %v151, 65535
  %v168 = vand.u32 %v152, 65535
  %v169 = vand.u32 %v153, 65535
  %v170 = vand.u32 %v154, 65535
  %v171 = vand.u32 %v155, 65535
  %v172 = vand.u32 %v156, 65535
  %v173 = vand.u32 %v157, 65535
  %v174 = vand.u32 %v158, 65535
  %v175 = vand.u32 %v159, 65535
  %v176 = vand.u32 %v160, 65535
  %v177 = vand.u32 %v161, 65535
  %v178 = vand.u32 %v162, 65535
  %v179 = vand.u32 %v163, 65535
  %v180 = vand.u32 %v164, 65535
  %v181 = vand.u32 %v165, 65535
  %v182 = vxor.u32 %v134, %v166
  %v183 = vxor.u32 %v135, %v167
  %v184 = vxor.u32 %v136, %v168
  %v185 = vxor.u32 %v137, %v169
  %v186 = vxor.u32 %v138, %v170
  %v187 = vxor.u32 %v139, %v171
  %v188 = vxor.u32 %v140, %v172
  %v189 = vxor.u32 %v141, %v173
  %v190 = vxor.u32 %v142, %v174
  %v191 = vxor.u32 %v143, %v175
  %v192 = vxor.u32 %v144, %v176
  %v193 = vxor.u32 %v145, %v177
  %v194 = vxor.u32 %v146, %v178
  %v195 = vxor.u32 %v147, %v179
  %v196 = vxor.u32 %v148, %v180
  %v197 = vxor.u32 %v149, %v181
  %v198 = vmul.u32 %v182, 2146121005
  %v199 = vmul.u32 %v183, 2146121005
  %v200 = vmul.u32 %v184, 2146121005
  %v201 = vmul.u32 %v185, 2146121005
  %v202 = vmul.u32 %v186, 2146121005
  %v203 = vmul.u32 %v187, 2146121005
  %v204 = vmul.u32 %v188, 2146121005
  %v205 = vmul.u32 %v189, 2146121005
  %v206 = vmul.u32 %v190, 2146121005
  %v207 = vmul.u32 %v191, 2146121005
  %v208 = vmul.u32 %v192, 2146121005
  %v209 = vmul.u32 %v193, 2146121005
  %v210 = vmul.u32 %v194, 2146121005
  %v211 = vmul.u32 %v195, 2146121005
  %v212 = vmul.u32 %v196, 2146121005
  %v213 = vmul.u32 %v197, 2146121005
  %v214 = vshra.s32 %v198, 15
  %v215 = vshra.s32 %v199, 15
  %v216 = vshra.s32 %v200, 15
  %v217 = vshra.s32 %v201, 15
  %v218 = vshra.s32 %v202, 15
  %v219 = vshra.s32 %v203, 15
  %v220 = vshra.s32 %v204, 15
  %v221 = vshra.s32 %v205, 15
  %v222 = vshra.s32 %v206, 15
  %v223 = vshra.s32 %v207, 15
  %v224 = vshra.s32 %v208, 15
  %v225 = vshra.s32 %v209, 15
  %v226 = vshra.s32 %v210, 15
  %v227 = vshra.s32 %v211, 15
  %v228 = vshra.s32 %v212, 15
  %v229 = vshra.s32 %v213, 15
  %v230 = vand.u32 %v214, 131071
  %v231 = vand.u32 %v215, 131071
  %v232 = vand.u32 %v216, 131071
  %v233 = vand.u32 %v217, 131071
  %v234 = vand.u32 %v218, 131071
  %v235 = vand.u32 %v219, 131071
  %v236 = vand.u32 %v220, 131071
  %v237 = vand.u32 %v221, 131071
  %v238 = vand.u32 %v222, 131071
  %v239 = vand.u32 %v223, 131071
  %v240 = vand.u32 %v224, 131071
  %v241 = vand.u32 %v225, 131071
  %v242 = vand.u32 %v226, 131071
  %v243 = vand.u32 %v227, 131071
  %v244 = vand.u32 %v228, 131071
  %v245 = vand.u32 %v229, 131071
  %v246 = vxor.u32 %v198, %v230
  %v247 = vxor.u32 %v199, %v231
  %v248 = vxor.u32 %v200, %v232
  %v249 = vxor.u32 %v201, %v233
  %v250 = vxor.u32 %v202, %v234
  %v251 = vxor.u32 %v203, %v235
  %v252 = vxor.u32 %v204, %v236
  %v253 = vxor.u32 %v205, %v237
  %v254 = vxor.u32 %v206, %v238
  %v255 = vxor.u32 %v207, %v239
  %v256 = vxor.u32 %v208, %v240
  %v257 = vxor.u32 %v209, %v241
  %v258 = vxor.u32 %v210, %v242
  %v259 = vxor.u32 %v211, %v243
  %v260 = vxor.u32 %v212, %v244
  %v261 = vxor.u32 %v213, %v245
  %v262 = vmul.u32 %v246, 2221713035
  %v263 = vmul.u32 %v247, 2221713035
  %v264 = vmul.u32 %v248, 2221713035
  %v265 = vmul.u32 %v249, 2221713035
  %v266 = vmul.u32 %v250, 2221713035
  %v267 = vmul.u32 %v251, 2221713035
  %v268 = vmul.u32 %v252, 2221713035
  %v269 = vmul.u32 %v253, 2221713035
  %v270 = vmul.u32 %v254, 2221713035
  %v271 = vmul.u32 %v255, 2221713035
  %v272 = vmul.u32 %v256, 2221713035
  %v273 = vmul.u32 %v257, 2221713035
  %v274 = vmul.u32 %v258, 2221713035
  %v275 = vmul.u32 %v259, 2221713035
  %v276 = vmul.u32 %v260, 2221713035
  %v277 = vmul.u32 %v261, 2221713035
  %v278 = vshra.s32 %v262, 16
  %v279 = vshra.s32 %v263, 16
  %v280 = vshra.s32 %v264, 16
  %v281 = vshra.s32 %v265, 16
  %v282 = vshra.s32 %v266, 16
  %v283 = vshra.s32 %v267, 16
  %v284 = vshra.s32 %v268, 16
  %v285 = vshra.s32 %v269, 16
  %v286 = vshra.s32 %v270, 16
  %v287 = vshra.s32 %v271, 16
  %v288 = vshra.s32 %v272, 16
  %v289 = vshra.s32 %v273, 16
  %v290 = vshra.s32 %v274, 16
  %v291 = vshra.s32 %v275, 16
  %v292 = vshra.s32 %v276, 16
  %v293 = vshra.s32 %v277, 16
  %v294 = vand.u32 %v278, 65535
  %v295 = vand.u32 %v279, 65535
  %v296 = vand.u32 %v280, 65535
  %v297 = vand.u32 %v281, 65535
  %v298 = vand.u32 %v282, 65535
  %v299 = vand.u32 %v283, 65535
  %v300 = vand.u32 %v284, 65535
  %v301 = vand.u32 %v285, 65535
  %v302 = vand.u32 %v286, 65535
  %v303 = vand.u32 %v287, 65535
  %v304 = vand.u32 %v288, 65535
  %v305 = vand.u32 %v289, 65535
  %v306 = vand.u32 %v290, 65535
  %v307 = vand.u32 %v291, 65535
  %v308 = vand.u32 %v292, 65535
  %v309 = vand.u32 %v293, 65535
  %v310 = vxor.u32 %v262, %v294
  %v311 = vxor.u32 %v263, %v295
  %v312 = vxor.u32 %v264, %v296
  %v313 = vxor.u32 %v265, %v297
  %v314 = vxor.u32 %v266, %v298
  %v315 = vxor.u32 %v267, %v299
  %v316 = vxor.u32 %v268, %v300
  %v317 = vxor.u32 %v269, %v301
  %v318 = vxor.u32 %v270, %v302
  %v319 = vxor.u32 %v271, %v303
  %v320 = vxor.u32 %v272, %v304
  %v321 = vxor.u32 %v273, %v305
  %v322 = vxor.u32 %v274, %v306
  %v323 = vxor.u32 %v275, %v307
  %v324 = vxor.u32 %v276, %v308
  %v325 = vxor.u32 %v277, %v309
  %v326 = vshra.s32 %v310, 8
  %v327 = vshra.s32 %v311, 8
  %v328 = vshra.s32 %v312, 8
  %v329 = vshra.s32 %v313, 8
  %v330 = vshra.s32 %v314, 8
  %v331 = vshra.s32 %v315, 8
  %v332 = vshra.s32 %v316, 8
  %v333 = vshra.s32 %v317, 8
  %v334 = vshra.s32 %v318, 8
  %v335 = vshra.s32 %v319, 8
  %v336 = vshra.s32 %v320, 8
  %v337 = vshra.s32 %v321, 8
  %v338 = vshra.s32 %v322, 8
  %v339 = vshra.s32 %v323, 8
  %v340 = vshra.s32 %v324, 8
  %v341 = vshra.s32 %v325, 8
  %v342 = vand.u32 %v326, 16777215
  %v343 = vand.u32 %v327, 16777215
  %v344 = vand.u32 %v328, 16777215
  %v345 = vand.u32 %v329, 16777215
  %v346 = vand.u32 %v330, 16777215
  %v347 = vand.u32 %v331, 16777215
  %v348 = vand.u32 %v332, 16777215
  %v349 = vand.u32 %v333, 16777215
  %v350 = vand.u32 %v334, 16777215
  %v351 = vand.u32 %v335, 16777215
  %v352 = vand.u32 %v336, 16777215
  %v353 = vand.u32 %v337, 16777215
  %v354 = vand.u32 %v338, 16777215
  %v355 = vand.u32 %v339, 16777215
  %v356 = vand.u32 %v340, 16777215
  %v357 = vand.u32 %v341, 16777215
  %vm358 = vcmp.ge.s32.totalorder %v342, 3355443
  %vm359 = vcmp.ge.s32.totalorder %v343, 3355443
  %vm360 = vcmp.ge.s32.totalorder %v344, 3355443
  %vm361 = vcmp.ge.s32.totalorder %v345, 3355443
  %vm362 = vcmp.ge.s32.totalorder %v346, 3355443
  %vm363 = vcmp.ge.s32.totalorder %v347, 3355443
  %vm364 = vcmp.ge.s32.totalorder %v348, 3355443
  %vm365 = vcmp.ge.s32.totalorder %v349, 3355443
  %vm366 = vcmp.ge.s32.totalorder %v350, 3355443
  %vm367 = vcmp.ge.s32.totalorder %v351, 3355443
  %vm368 = vcmp.ge.s32.totalorder %v352, 3355443
  %vm369 = vcmp.ge.s32.totalorder %v353, 3355443
  %vm370 = vcmp.ge.s32.totalorder %v354, 3355443
  %vm371 = vcmp.ge.s32.totalorder %v355, 3355443
  %vm372 = vcmp.ge.s32.totalorder %v356, 3355443
  %vm373 = vcmp.ge.s32.totalorder %v357, 3355443
  %v374 = vmul.f32 %v31, 1.25
  %v375 = vmul.f32 %v32, 1.25
  %v376 = vmul.f32 %v33, 1.25
  %v377 = vmul.f32 %v34, 1.25
  %v378 = vmul.f32 %v35, 1.25
  %v379 = vmul.f32 %v36, 1.25
  %v380 = vmul.f32 %v37, 1.25
  %v381 = vmul.f32 %v38, 1.25
  %v382 = vmul.f32 %v39, 1.25
  %v383 = vmul.f32 %v40, 1.25
  %v384 = vmul.f32 %v41, 1.25
  %v385 = vmul.f32 %v42, 1.25
  %v386 = vmul.f32 %v43, 1.25
  %v387 = vmul.f32 %v44, 1.25
  %v388 = vmul.f32 %v45, 1.25
  %v389 = vmul.f32 %v46, 1.25
  %v390 = vsel %vm358, %v374, 0.0
  %v391 = vsel %vm359, %v375, 0.0
  %v392 = vsel %vm360, %v376, 0.0
  %v393 = vsel %vm361, %v377, 0.0
  %v394 = vsel %vm362, %v378, 0.0
  %v395 = vsel %vm363, %v379, 0.0
  %v396 = vsel %vm364, %v380, 0.0
  %v397 = vsel %vm365, %v381, 0.0
  %v398 = vsel %vm366, %v382, 0.0
  %v399 = vsel %vm367, %v383, 0.0
  %v400 = vsel %vm368, %v384, 0.0
  %v401 = vsel %vm369, %v385, 0.0
  %v402 = vsel %vm370, %v386, 0.0
  %v403 = vsel %vm371, %v387, 0.0
  %v404 = vsel %vm372, %v388, 0.0
  %v405 = vsel %vm373, %v389, 0.0
  %v406 = vpack.c.bf16 %v391, %v390
  %v407 = vpack.c.bf16 %v393, %v392
  %v408 = vpack.c.bf16 %v395, %v394
  %v409 = vpack.c.bf16 %v397, %v396
  %v410 = vpack.c.bf16 %v399, %v398
  %v411 = vpack.c.bf16 %v401, %v400
  %v412 = vpack.c.bf16 %v403, %v402
  %v413 = vpack.c.bf16 %v405, %v404
  %v414 = vld [vmem:[%s2] sm:$0xf]
  %v415 = vld [vmem:[%s2 + $0x4] sm:$0xf]
  %v416 = vld [vmem:[%s2 + $0x8] sm:$0xf]
  %v417 = vld [vmem:[%s2 + $0xc] sm:$0xf]
  %v418 = vld [vmem:[%s2 + $0x10] sm:$0xf]
  %v419 = vld [vmem:[%s2 + $0x14] sm:$0xf]
  %v420 = vld [vmem:[%s2 + $0x18] sm:$0xf]
  %v421 = vld [vmem:[%s2 + $0x1c] sm:$0xf]
  %v422 = vld [vmem:[%s2 + $0x20] sm:$0xf]
  %v423 = vld [vmem:[%s2 + $0x24] sm:$0xf]
  %v424 = vld [vmem:[%s2 + $0x28] sm:$0xf]
  %v425 = vld [vmem:[%s2 + $0x2c] sm:$0xf]
  %v426 = vld [vmem:[%s2 + $0x30] sm:$0xf]
  %v427 = vld [vmem:[%s2 + $0x34] sm:$0xf]
  %v428 = vld [vmem:[%s2 + $0x38] sm:$0xf]
  %v429 = vld [vmem:[%s2 + $0x3c] sm:$0xf]
  %v430 = vld [vmem:[%s3] sm:$0x1]
  %v432 = vlaneseq
  %v433 = vshrl.u32 %v432, 7
  %v434 = vsub.s32 0, %v433
  %v435 = vrot.slane %v430, %v434
  %v453 = vunpack.c.l.b16 %v414
  %v454 = vunpack.c.l.b16 %v415
  %v455 = vunpack.c.l.b16 %v416
  %v456 = vunpack.c.l.b16 %v417
  %v457 = vunpack.c.l.b16 %v418
  %v458 = vunpack.c.l.b16 %v419
  %v459 = vunpack.c.l.b16 %v420
  %v460 = vunpack.c.l.b16 %v421
  %v461 = vunpack.c.l.b16 %v422
  %v462 = vunpack.c.l.b16 %v423
  %v463 = vunpack.c.l.b16 %v424
  %v464 = vunpack.c.l.b16 %v425
  %v465 = vunpack.c.l.b16 %v426
  %v466 = vunpack.c.l.b16 %v427
  %v467 = vunpack.c.l.b16 %v428
  %v468 = vunpack.c.l.b16 %v429
  %v469 = vpack.c.b16 %v454, %v453
  %v470 = vpack.c.b16 %v456, %v455
  %v471 = vpack.c.b16 %v458, %v457
  %v472 = vpack.c.b16 %v460, %v459
  %v473 = vpack.c.b16 %v462, %v461
  %v474 = vpack.c.b16 %v464, %v463
  %v475 = vpack.c.b16 %v466, %v465
  %v476 = vpack.c.b16 %v468, %v467
  %485 = vmatprep.subr.bf16.mxu0 0
  %486 = vmatpush1.bf16.msra.mxu0 %v469
  %487 = vmatprep.subr.bf16.mxu0 0
  %488 = vmatpush1.bf16.msra.mxu0 %v470
  %489 = vmatprep.subr.bf16.mxu0 0
  %490 = vmatpush1.bf16.msra.mxu0 %v471
  %491 = vmatprep.subr.bf16.mxu0 0
  %492 = vmatpush1.bf16.msra.mxu0 %v472
  %493 = vmatprep.subr.bf16.mxu0 0
  %494 = vmatpush1.bf16.msra.mxu0 %v473
  %495 = vmatprep.subr.bf16.mxu0 0
  %496 = vmatpush1.bf16.msra.mxu0 %v474
  %497 = vmatprep.subr.bf16.mxu0 0
  %498 = vmatpush1.bf16.msra.mxu0 %v475
  %499 = vmatprep.subr.bf16.mxu0 0
  %500 = vmatpush1.bf16.msra.mxu0 %v476
  %501 = vmatprep.subr.bf16.mxu0 0
  %502 = vmatpush1.bf16.msra.mxu0 0
  %503 = vmatprep.subr.bf16.mxu0 0
  %504 = vmatpush1.bf16.msra.mxu0 0
  %505 = vmatprep.subr.bf16.mxu0 0
  %506 = vmatpush1.bf16.msra.mxu0 0
  %507 = vmatprep.subr.bf16.mxu0 0
  %508 = vmatpush1.bf16.msra.mxu0 0
  %509 = vmatprep.subr.bf16.mxu0 0
  %510 = vmatpush1.bf16.msra.mxu0 0
  %511 = vmatprep.subr.bf16.mxu0 0
  %512 = vmatpush1.bf16.msra.mxu0 0
  %513 = vmatprep.subr.bf16.mxu0 0
  %514 = vmatpush1.bf16.msra.mxu0 0
  %515 = vmatprep.subr.bf16.mxu0 0
  %516 = vmatpush1.bf16.msra.mxu0 0
  %517 = vmatprep.mubr.bf16.mxu0 0
  %518 = vmatmul.mubr.bf16.gmra.mrb[0].mxu0 %v406
  %v519 = vpop.f32.mrb[0].mxu0
  %v520 = vadd.f32 %v435, %v519
  %v521 = vpop.f32.mrb[0].mxu0
  %v522 = vpop.f32.mrb[0].mxu0
  %v523 = vadd.f32 %v435, %v522
  %v524 = vpop.f32.mrb[0].mxu0
  %525 = vmatprep.mubr.bf16.mxu0 0
  %526 = vmatmul.mubr.bf16.gmra.mrb[0].mxu0 %v407
  %v527 = vpop.f32.mrb[0].mxu0
  %v528 = vadd.f32 %v435, %v527
  %v529 = vpop.f32.mrb[0].mxu0
  %v530 = vpop.f32.mrb[0].mxu0
  %v531 = vadd.f32 %v435, %v530
  %v532 = vpop.f32.mrb[0].mxu0
  %533 = vmatprep.mubr.bf16.mxu0 0
  %534 = vmatmul.mubr.bf16.gmra.mrb[0].mxu0 %v408
  %v535 = vpop.f32.mrb[0].mxu0
  %v536 = vadd.f32 %v435, %v535
  %v537 = vpop.f32.mrb[0].mxu0
  %v538 = vpop.f32.mrb[0].mxu0
  %v539 = vadd.f32 %v435, %v538
  %v540 = vpop.f32.mrb[0].mxu0
  %541 = vmatprep.mubr.bf16.mxu0 0
  %542 = vmatmul.mubr.bf16.gmra.mrb[0].mxu0 %v409
  %v543 = vpop.f32.mrb[0].mxu0
  %v544 = vadd.f32 %v435, %v543
  %v545 = vpop.f32.mrb[0].mxu0
  %v546 = vpop.f32.mrb[0].mxu0
  %v547 = vadd.f32 %v435, %v546
  %v548 = vpop.f32.mrb[0].mxu0
  %549 = vmatprep.mubr.bf16.mxu0 0
  %550 = vmatmul.mubr.bf16.gmra.mrb[0].mxu0 %v410
  %v551 = vpop.f32.mrb[0].mxu0
  %v552 = vadd.f32 %v435, %v551
  %v553 = vpop.f32.mrb[0].mxu0
  %v554 = vpop.f32.mrb[0].mxu0
  %v555 = vadd.f32 %v435, %v554
  %v556 = vpop.f32.mrb[0].mxu0
  %557 = vmatprep.mubr.bf16.mxu0 0
  %558 = vmatmul.mubr.bf16.gmra.mrb[0].mxu0 %v411
  %v559 = vpop.f32.mrb[0].mxu0
  %v560 = vadd.f32 %v435, %v559
  %v561 = vpop.f32.mrb[0].mxu0
  %v562 = vpop.f32.mrb[0].mxu0
  %v563 = vadd.f32 %v435, %v562
  %v564 = vpop.f32.mrb[0].mxu0
  %565 = vmatprep.mubr.bf16.mxu0 0
  %566 = vmatmul.mubr.bf16.gmra.mrb[0].mxu0 %v412
  %v567 = vpop.f32.mrb[0].mxu0
  %v568 = vadd.f32 %v435, %v567
  %v569 = vpop.f32.mrb[0].mxu0
  %v570 = vpop.f32.mrb[0].mxu0
  %v571 = vadd.f32 %v435, %v570
  %v572 = vpop.f32.mrb[0].mxu0
  %573 = vmatprep.mubr.bf16.mxu0 0
  %574 = vmatmul.mubr.bf16.gmra.mrb[0].mxu0 %v413
  %v575 = vpop.f32.mrb[0].mxu0
  %v576 = vadd.f32 %v435, %v575
  %v577 = vpop.f32.mrb[0].mxu0
  %v578 = vpop.f32.mrb[0].mxu0
  %v579 = vadd.f32 %v435, %v578
  %v580 = vpop.f32.mrb[0].mxu0
  %581 = vdwg.mxu0
  %v582 = vadd.s32 %v118, 1180158774
  %v583 = vadd.s32 %v119, 1180158774
  %v584 = vadd.s32 %v120, 1180158774
  %v585 = vadd.s32 %v121, 1180158774
  %v586 = vadd.s32 %v122, 1180158774
  %v587 = vadd.s32 %v123, 1180158774
  %v588 = vadd.s32 %v124, 1180158774
  %v589 = vadd.s32 %v125, 1180158774
  %v590 = vadd.s32 %v126, 1180158774
  %v591 = vadd.s32 %v127, 1180158774
  %v592 = vadd.s32 %v128, 1180158774
  %v593 = vadd.s32 %v129, 1180158774
  %v594 = vadd.s32 %v130, 1180158774
  %v595 = vadd.s32 %v131, 1180158774
  %v596 = vadd.s32 %v132, 1180158774
  %v597 = vadd.s32 %v133, 1180158774
  %v598 = vshra.s32 %v582, 16
  %v599 = vshra.s32 %v583, 16
  %v600 = vshra.s32 %v584, 16
  %v601 = vshra.s32 %v585, 16
  %v602 = vshra.s32 %v586, 16
  %v603 = vshra.s32 %v587, 16
  %v604 = vshra.s32 %v588, 16
  %v605 = vshra.s32 %v589, 16
  %v606 = vshra.s32 %v590, 16
  %v607 = vshra.s32 %v591, 16
  %v608 = vshra.s32 %v592, 16
  %v609 = vshra.s32 %v593, 16
  %v610 = vshra.s32 %v594, 16
  %v611 = vshra.s32 %v595, 16
  %v612 = vshra.s32 %v596, 16
  %v613 = vshra.s32 %v597, 16
  %v614 = vand.u32 %v598, 65535
  %v615 = vand.u32 %v599, 65535
  %v616 = vand.u32 %v600, 65535
  %v617 = vand.u32 %v601, 65535
  %v618 = vand.u32 %v602, 65535
  %v619 = vand.u32 %v603, 65535
  %v620 = vand.u32 %v604, 65535
  %v621 = vand.u32 %v605, 65535
  %v622 = vand.u32 %v606, 65535
  %v623 = vand.u32 %v607, 65535
  %v624 = vand.u32 %v608, 65535
  %v625 = vand.u32 %v609, 65535
  %v626 = vand.u32 %v610, 65535
  %v627 = vand.u32 %v611, 65535
  %v628 = vand.u32 %v612, 65535
  %v629 = vand.u32 %v613, 65535
  %v630 = vxor.u32 %v582, %v614
  %v631 = vxor.u32 %v583, %v615
  %v632 = vxor.u32 %v584, %v616
  %v633 = vxor.u32 %v585, %v617
  %v634 = vxor.u32 %v586, %v618
  %v635 = vxor.u32 %v587, %v619
  %v636 = vxor.u32 %v588, %v620
  %v637 = vxor.u32 %v589, %v621
  %v638 = vxor.u32 %v590, %v622
  %v639 = vxor.u32 %v591, %v623
  %v640 = vxor.u32 %v592, %v624
  %v641 = vxor.u32 %v593, %v625
  %v642 = vxor.u32 %v594, %v626
  %v643 = vxor.u32 %v595, %v627
  %v644 = vxor.u32 %v596, %v628
  %v645 = vxor.u32 %v597, %v629
  %v646 = vmul.u32 %v630, 2146121005
  %v647 = vmul.u32 %v631, 2146121005
  %v648 = vmul.u32 %v632, 2146121005
  %v649 = vmul.u32 %v633, 2146121005
  %v650 = vmul.u32 %v634, 2146121005
  %v651 = vmul.u32 %v635, 2146121005
  %v652 = vmul.u32 %v636, 2146121005
  %v653 = vmul.u32 %v637, 2146121005
  %v654 = vmul.u32 %v638, 2146121005
  %v655 = vmul.u32 %v639, 2146121005
  %v656 = vmul.u32 %v640, 2146121005
  %v657 = vmul.u32 %v641, 2146121005
  %v658 = vmul.u32 %v642, 2146121005
  %v659 = vmul.u32 %v643, 2146121005
  %v660 = vmul.u32 %v644, 2146121005
  %v661 = vmul.u32 %v645, 2146121005
  %v662 = vshra.s32 %v646, 15
  %v663 = vshra.s32 %v647, 15
  %v664 = vshra.s32 %v648, 15
  %v665 = vshra.s32 %v649, 15
  %v666 = vshra.s32 %v650, 15
  %v667 = vshra.s32 %v651, 15
  %v668 = vshra.s32 %v652, 15
  %v669 = vshra.s32 %v653, 15
  %v670 = vshra.s32 %v654, 15
  %v671 = vshra.s32 %v655, 15
  %v672 = vshra.s32 %v656, 15
  %v673 = vshra.s32 %v657, 15
  %v674 = vshra.s32 %v658, 15
  %v675 = vshra.s32 %v659, 15
  %v676 = vshra.s32 %v660, 15
  %v677 = vshra.s32 %v661, 15
  %v678 = vand.u32 %v662, 131071
  %v679 = vand.u32 %v663, 131071
  %v680 = vand.u32 %v664, 131071
  %v681 = vand.u32 %v665, 131071
  %v682 = vand.u32 %v666, 131071
  %v683 = vand.u32 %v667, 131071
  %v684 = vand.u32 %v668, 131071
  %v685 = vand.u32 %v669, 131071
  %v686 = vand.u32 %v670, 131071
  %v687 = vand.u32 %v671, 131071
  %v688 = vand.u32 %v672, 131071
  %v689 = vand.u32 %v673, 131071
  %v690 = vand.u32 %v674, 131071
  %v691 = vand.u32 %v675, 131071
  %v692 = vand.u32 %v676, 131071
  %v693 = vand.u32 %v677, 131071
  %v694 = vxor.u32 %v646, %v678
  %v695 = vxor.u32 %v647, %v679
  %v696 = vxor.u32 %v648, %v680
  %v697 = vxor.u32 %v649, %v681
  %v698 = vxor.u32 %v650, %v682
  %v699 = vxor.u32 %v651, %v683
  %v700 = vxor.u32 %v652, %v684
  %v701 = vxor.u32 %v653, %v685
  %v702 = vxor.u32 %v654, %v686
  %v703 = vxor.u32 %v655, %v687
  %v704 = vxor.u32 %v656, %v688
  %v705 = vxor.u32 %v657, %v689
  %v706 = vxor.u32 %v658, %v690
  %v707 = vxor.u32 %v659, %v691
  %v708 = vxor.u32 %v660, %v692
  %v709 = vxor.u32 %v661, %v693
  %v710 = vmul.u32 %v694, 2221713035
  %v711 = vmul.u32 %v695, 2221713035
  %v712 = vmul.u32 %v696, 2221713035
  %v713 = vmul.u32 %v697, 2221713035
  %v714 = vmul.u32 %v698, 2221713035
  %v715 = vmul.u32 %v699, 2221713035
  %v716 = vmul.u32 %v700, 2221713035
  %v717 = vmul.u32 %v701, 2221713035
  %v718 = vmul.u32 %v702, 2221713035
  %v719 = vmul.u32 %v703, 2221713035
  %v720 = vmul.u32 %v704, 2221713035
  %v721 = vmul.u32 %v705, 2221713035
  %v722 = vmul.u32 %v706, 2221713035
  %v723 = vmul.u32 %v707, 2221713035
  %v724 = vmul.u32 %v708, 2221713035
  %v725 = vmul.u32 %v709, 2221713035
  %v726 = vshra.s32 %v710, 16
  %v727 = vshra.s32 %v711, 16
  %v728 = vshra.s32 %v712, 16
  %v729 = vshra.s32 %v713, 16
  %v730 = vshra.s32 %v714, 16
  %v731 = vshra.s32 %v715, 16
  %v732 = vshra.s32 %v716, 16
  %v733 = vshra.s32 %v717, 16
  %v734 = vshra.s32 %v718, 16
  %v735 = vshra.s32 %v719, 16
  %v736 = vshra.s32 %v720, 16
  %v737 = vshra.s32 %v721, 16
  %v738 = vshra.s32 %v722, 16
  %v739 = vshra.s32 %v723, 16
  %v740 = vshra.s32 %v724, 16
  %v741 = vshra.s32 %v725, 16
  %v742 = vand.u32 %v726, 65535
  %v743 = vand.u32 %v727, 65535
  %v744 = vand.u32 %v728, 65535
  %v745 = vand.u32 %v729, 65535
  %v746 = vand.u32 %v730, 65535
  %v747 = vand.u32 %v731, 65535
  %v748 = vand.u32 %v732, 65535
  %v749 = vand.u32 %v733, 65535
  %v750 = vand.u32 %v734, 65535
  %v751 = vand.u32 %v735, 65535
  %v752 = vand.u32 %v736, 65535
  %v753 = vand.u32 %v737, 65535
  %v754 = vand.u32 %v738, 65535
  %v755 = vand.u32 %v739, 65535
  %v756 = vand.u32 %v740, 65535
  %v757 = vand.u32 %v741, 65535
  %v758 = vxor.u32 %v710, %v742
  %v759 = vxor.u32 %v711, %v743
  %v760 = vxor.u32 %v712, %v744
  %v761 = vxor.u32 %v713, %v745
  %v762 = vxor.u32 %v714, %v746
  %v763 = vxor.u32 %v715, %v747
  %v764 = vxor.u32 %v716, %v748
  %v765 = vxor.u32 %v717, %v749
  %v766 = vxor.u32 %v718, %v750
  %v767 = vxor.u32 %v719, %v751
  %v768 = vxor.u32 %v720, %v752
  %v769 = vxor.u32 %v721, %v753
  %v770 = vxor.u32 %v722, %v754
  %v771 = vxor.u32 %v723, %v755
  %v772 = vxor.u32 %v724, %v756
  %v773 = vxor.u32 %v725, %v757
  %v774 = vshra.s32 %v758, 8
  %v775 = vshra.s32 %v759, 8
  %v776 = vshra.s32 %v760, 8
  %v777 = vshra.s32 %v761, 8
  %v778 = vshra.s32 %v762, 8
  %v779 = vshra.s32 %v763, 8
  %v780 = vshra.s32 %v764, 8
  %v781 = vshra.s32 %v765, 8
  %v782 = vshra.s32 %v766, 8
  %v783 = vshra.s32 %v767, 8
  %v784 = vshra.s32 %v768, 8
  %v785 = vshra.s32 %v769, 8
  %v786 = vshra.s32 %v770, 8
  %v787 = vshra.s32 %v771, 8
  %v788 = vshra.s32 %v772, 8
  %v789 = vshra.s32 %v773, 8
  %v790 = vand.u32 %v774, 16777215
  %v791 = vand.u32 %v775, 16777215
  %v792 = vand.u32 %v776, 16777215
  %v793 = vand.u32 %v777, 16777215
  %v794 = vand.u32 %v778, 16777215
  %v795 = vand.u32 %v779, 16777215
  %v796 = vand.u32 %v780, 16777215
  %v797 = vand.u32 %v781, 16777215
  %v798 = vand.u32 %v782, 16777215
  %v799 = vand.u32 %v783, 16777215
  %v800 = vand.u32 %v784, 16777215
  %v801 = vand.u32 %v785, 16777215
  %v802 = vand.u32 %v786, 16777215
  %v803 = vand.u32 %v787, 16777215
  %v804 = vand.u32 %v788, 16777215
  %v805 = vand.u32 %v789, 16777215
  %vm806 = vcmp.ge.s32.totalorder %v790, 8388608
  %vm807 = vcmp.ge.s32.totalorder %v791, 8388608
  %vm808 = vcmp.ge.s32.totalorder %v792, 8388608
  %vm809 = vcmp.ge.s32.totalorder %v793, 8388608
  %vm810 = vcmp.ge.s32.totalorder %v794, 8388608
  %vm811 = vcmp.ge.s32.totalorder %v795, 8388608
  %vm812 = vcmp.ge.s32.totalorder %v796, 8388608
  %vm813 = vcmp.ge.s32.totalorder %v797, 8388608
  %vm814 = vcmp.ge.s32.totalorder %v798, 8388608
  %vm815 = vcmp.ge.s32.totalorder %v799, 8388608
  %vm816 = vcmp.ge.s32.totalorder %v800, 8388608
  %vm817 = vcmp.ge.s32.totalorder %v801, 8388608
  %vm818 = vcmp.ge.s32.totalorder %v802, 8388608
  %vm819 = vcmp.ge.s32.totalorder %v803, 8388608
  %vm820 = vcmp.ge.s32.totalorder %v804, 8388608
  %vm821 = vcmp.ge.s32.totalorder %v805, 8388608
  %v822 = vmul.f32 %v520, 2.0
  %v823 = vmul.f32 %v523, 2.0
  %v824 = vmul.f32 %v528, 2.0
  %v825 = vmul.f32 %v531, 2.0
  %v826 = vmul.f32 %v536, 2.0
  %v827 = vmul.f32 %v539, 2.0
  %v828 = vmul.f32 %v544, 2.0
  %v829 = vmul.f32 %v547, 2.0
  %v830 = vmul.f32 %v552, 2.0
  %v831 = vmul.f32 %v555, 2.0
  %v832 = vmul.f32 %v560, 2.0
  %v833 = vmul.f32 %v563, 2.0
  %v834 = vmul.f32 %v568, 2.0
  %v835 = vmul.f32 %v571, 2.0
  %v836 = vmul.f32 %v576, 2.0
  %v837 = vmul.f32 %v579, 2.0
  %v838 = vsel %vm806, %v822, 0.0
  %v839 = vsel %vm807, %v823, 0.0
  %v840 = vsel %vm808, %v824, 0.0
  %v841 = vsel %vm809, %v825, 0.0
  %v842 = vsel %vm810, %v826, 0.0
  %v843 = vsel %vm811, %v827, 0.0
  %v844 = vsel %vm812, %v828, 0.0
  %v845 = vsel %vm813, %v829, 0.0
  %v846 = vsel %vm814, %v830, 0.0
  %v847 = vsel %vm815, %v831, 0.0
  %v848 = vsel %vm816, %v832, 0.0
  %v849 = vsel %vm817, %v833, 0.0
  %v850 = vsel %vm818, %v834, 0.0
  %v851 = vsel %vm819, %v835, 0.0
  %v852 = vsel %vm820, %v836, 0.0
  %v853 = vsel %vm821, %v837, 0.0
  %v854 = vpack.c.bf16 %v839, %v838
  %v855 = vpack.c.bf16 %v841, %v840
  %v856 = vpack.c.bf16 %v843, %v842
  %v857 = vpack.c.bf16 %v845, %v844
  %v858 = vpack.c.bf16 %v847, %v846
  %v859 = vpack.c.bf16 %v849, %v848
  %v860 = vpack.c.bf16 %v851, %v850
  %v861 = vpack.c.bf16 %v853, %v852
  %v862 = vld [vmem:[%s4] sm:$0xf]
  %v863 = vld [vmem:[%s4 + $0x4] sm:$0xf]
  %v864 = vld [vmem:[%s4 + $0x8] sm:$0xf]
  %v865 = vld [vmem:[%s4 + $0xc] sm:$0xf]
  %v866 = vld [vmem:[%s4 + $0x10] sm:$0xf]
  %v867 = vld [vmem:[%s4 + $0x14] sm:$0xf]
  %v868 = vld [vmem:[%s4 + $0x18] sm:$0xf]
  %v869 = vld [vmem:[%s4 + $0x1c] sm:$0xf]
  %v870 = vld [vmem:[%s4 + $0x20] sm:$0xf]
  %v871 = vld [vmem:[%s4 + $0x24] sm:$0xf]
  %v872 = vld [vmem:[%s4 + $0x28] sm:$0xf]
  %v873 = vld [vmem:[%s4 + $0x2c] sm:$0xf]
  %v874 = vld [vmem:[%s4 + $0x30] sm:$0xf]
  %v875 = vld [vmem:[%s4 + $0x34] sm:$0xf]
  %v876 = vld [vmem:[%s4 + $0x38] sm:$0xf]
  %v877 = vld [vmem:[%s4 + $0x3c] sm:$0xf]
  %v878 = vld [vmem:[%s5] sm:$0x1]
  %v880 = vlaneseq
  %v881 = vshrl.u32 %v880, 7
  %v882 = vsub.s32 0, %v881
  %v883 = vrot.slane %v878, %v882
  %v901 = vunpack.c.l.b16 %v862
  %v902 = vunpack.c.l.b16 %v863
  %v903 = vunpack.c.l.b16 %v864
  %v904 = vunpack.c.l.b16 %v865
  %v905 = vunpack.c.l.b16 %v866
  %v906 = vunpack.c.l.b16 %v867
  %v907 = vunpack.c.l.b16 %v868
  %v908 = vunpack.c.l.b16 %v869
  %v909 = vunpack.c.l.b16 %v870
  %v910 = vunpack.c.l.b16 %v871
  %v911 = vunpack.c.l.b16 %v872
  %v912 = vunpack.c.l.b16 %v873
  %v913 = vunpack.c.l.b16 %v874
  %v914 = vunpack.c.l.b16 %v875
  %v915 = vunpack.c.l.b16 %v876
  %v916 = vunpack.c.l.b16 %v877
  %v917 = vpack.c.b16 %v902, %v901
  %v918 = vpack.c.b16 %v904, %v903
  %v919 = vpack.c.b16 %v906, %v905
  %v920 = vpack.c.b16 %v908, %v907
  %v921 = vpack.c.b16 %v910, %v909
  %v922 = vpack.c.b16 %v912, %v911
  %v923 = vpack.c.b16 %v914, %v913
  %v924 = vpack.c.b16 %v916, %v915
  %933 = vmatprep.subr.bf16.mxu0 0
  %934 = vmatpush1.bf16.msra.mxu0 %v917
  %935 = vmatprep.subr.bf16.mxu0 0
  %936 = vmatpush1.bf16.msra.mxu0 %v918
  %937 = vmatprep.subr.bf16.mxu0 0
  %938 = vmatpush1.bf16.msra.mxu0 %v919
  %939 = vmatprep.subr.bf16.mxu0 0
  %940 = vmatpush1.bf16.msra.mxu0 %v920
  %941 = vmatprep.subr.bf16.mxu0 0
  %942 = vmatpush1.bf16.msra.mxu0 %v921
  %943 = vmatprep.subr.bf16.mxu0 0
  %944 = vmatpush1.bf16.msra.mxu0 %v922
  %945 = vmatprep.subr.bf16.mxu0 0
  %946 = vmatpush1.bf16.msra.mxu0 %v923
  %947 = vmatprep.subr.bf16.mxu0 0
  %948 = vmatpush1.bf16.msra.mxu0 %v924
  %949 = vmatprep.subr.bf16.mxu0 0
  %950 = vmatpush1.bf16.msra.mxu0 0
  %951 = vmatprep.subr.bf16.mxu0 0
  %952 = vmatpush1.bf16.msra.mxu0 0
  %953 = vmatprep.subr.bf16.mxu0 0
  %954 = vmatpush1.bf16.msra.mxu0 0
  %955 = vmatprep.subr.bf16.mxu0 0
  %956 = vmatpush1.bf16.msra.mxu0 0
  %957 = vmatprep.subr.bf16.mxu0 0
  %958 = vmatpush1.bf16.msra.mxu0 0
  %959 = vmatprep.subr.bf16.mxu0 0
  %960 = vmatpush1.bf16.msra.mxu0 0
  %961 = vmatprep.subr.bf16.mxu0 0
  %962 = vmatpush1.bf16.msra.mxu0 0
  %963 = vmatprep.subr.bf16.mxu0 0
  %964 = vmatpush1.bf16.msra.mxu0 0
  %965 = vmatprep.mubr.bf16.mxu0 0
  %966 = vmatmul.mubr.bf16.gmra.mrb[0].mxu0 %v854
  %v967 = vpop.f32.mrb[0].mxu0
  %v968 = vadd.f32 %v883, %v967
  %v969 = vpop.f32.mrb[0].mxu0
  %v970 = vpop.f32.mrb[0].mxu0
  %v971 = vadd.f32 %v883, %v970
  %v972 = vpop.f32.mrb[0].mxu0
  %973 = vmatprep.mubr.bf16.mxu0 0
  %974 = vmatmul.mubr.bf16.gmra.mrb[0].mxu0 %v855
  %v975 = vpop.f32.mrb[0].mxu0
  %v976 = vadd.f32 %v883, %v975
  %v977 = vpop.f32.mrb[0].mxu0
  %v978 = vpop.f32.mrb[0].mxu0
  %v979 = vadd.f32 %v883, %v978
  %v980 = vpop.f32.mrb[0].mxu0
  %981 = vmatprep.mubr.bf16.mxu0 0
  %982 = vmatmul.mubr.bf16.gmra.mrb[0].mxu0 %v856
  %v983 = vpop.f32.mrb[0].mxu0
  %v984 = vadd.f32 %v883, %v983
  %v985 = vpop.f32.mrb[0].mxu0
  %v986 = vpop.f32.mrb[0].mxu0
  %v987 = vadd.f32 %v883, %v986
  %v988 = vpop.f32.mrb[0].mxu0
  %989 = vmatprep.mubr.bf16.mxu0 0
  %990 = vmatmul.mubr.bf16.gmra.mrb[0].mxu0 %v857
  %v991 = vpop.f32.mrb[0].mxu0
  %v992 = vadd.f32 %v883, %v991
  %v993 = vpop.f32.mrb[0].mxu0
  %v994 = vpop.f32.mrb[0].mxu0
  %v995 = vadd.f32 %v883, %v994
  %v996 = vpop.f32.mrb[0].mxu0
  %997 = vmatprep.mubr.bf16.mxu0 0
  %998 = vmatmul.mubr.bf16.gmra.mrb[0].mxu0 %v858
  %v999 = vpop.f32.mrb[0].mxu0
  %v1000 = vadd.f32 %v883, %v999
  %v1001 = vpop.f32.mrb[0].mxu0
  %v1002 = vpop.f32.mrb[0].mxu0
  %v1003 = vadd.f32 %v883, %v1002
  %v1004 = vpop.f32.mrb[0].mxu0
  %1005 = vmatprep.mubr.bf16.mxu0 0
  %1006 = vmatmul.mubr.bf16.gmra.mrb[0].mxu0 %v859
  %v1007 = vpop.f32.mrb[0].mxu0
  %v1008 = vadd.f32 %v883, %v1007
  %v1009 = vpop.f32.mrb[0].mxu0
  %v1010 = vpop.f32.mrb[0].mxu0
  %v1011 = vadd.f32 %v883, %v1010
  %v1012 = vpop.f32.mrb[0].mxu0
  %1013 = vmatprep.mubr.bf16.mxu0 0
  %1014 = vmatmul.mubr.bf16.gmra.mrb[0].mxu0 %v860
  %v1015 = vpop.f32.mrb[0].mxu0
  %v1016 = vadd.f32 %v883, %v1015
  %v1017 = vpop.f32.mrb[0].mxu0
  %v1018 = vpop.f32.mrb[0].mxu0
  %v1019 = vadd.f32 %v883, %v1018
  %v1020 = vpop.f32.mrb[0].mxu0
  %1021 = vmatprep.mubr.bf16.mxu0 0
  %1022 = vmatmul.mubr.bf16.gmra.mrb[0].mxu0 %v861
  %v1023 = vpop.f32.mrb[0].mxu0
  %v1024 = vadd.f32 %v883, %v1023
  %v1025 = vpop.f32.mrb[0].mxu0
  %v1026 = vpop.f32.mrb[0].mxu0
  %v1027 = vadd.f32 %v883, %v1026
  %v1028 = vpop.f32.mrb[0].mxu0
  %1029 = vdwg.mxu0
  %v1030 = vadd.s32 %v118, 696496337
  %v1031 = vadd.s32 %v119, 696496337
  %v1032 = vadd.s32 %v120, 696496337
  %v1033 = vadd.s32 %v121, 696496337
  %v1034 = vadd.s32 %v122, 696496337
  %v1035 = vadd.s32 %v123, 696496337
  %v1036 = vadd.s32 %v124, 696496337
  %v1037 = vadd.s32 %v125, 696496337
  %v1038 = vadd.s32 %v126, 696496337
  %v1039 = vadd.s32 %v127, 696496337
  %v1040 = vadd.s32 %v128, 696496337
  %v1041 = vadd.s32 %v129, 696496337
  %v1042 = vadd.s32 %v130, 696496337
  %v1043 = vadd.s32 %v131, 696496337
  %v1044 = vadd.s32 %v132, 696496337
  %v1045 = vadd.s32 %v133, 696496337
  %v1046 = vshra.s32 %v1030, 16
  %v1047 = vshra.s32 %v1031, 16
  %v1048 = vshra.s32 %v1032, 16
  %v1049 = vshra.s32 %v1033, 16
  %v1050 = vshra.s32 %v1034, 16
  %v1051 = vshra.s32 %v1035, 16
  %v1052 = vshra.s32 %v1036, 16
  %v1053 = vshra.s32 %v1037, 16
  %v1054 = vshra.s32 %v1038, 16
  %v1055 = vshra.s32 %v1039, 16
  %v1056 = vshra.s32 %v1040, 16
  %v1057 = vshra.s32 %v1041, 16
  %v1058 = vshra.s32 %v1042, 16
  %v1059 = vshra.s32 %v1043, 16
  %v1060 = vshra.s32 %v1044, 16
  %v1061 = vshra.s32 %v1045, 16
  %v1062 = vand.u32 %v1046, 65535
  %v1063 = vand.u32 %v1047, 65535
  %v1064 = vand.u32 %v1048, 65535
  %v1065 = vand.u32 %v1049, 65535
  %v1066 = vand.u32 %v1050, 65535
  %v1067 = vand.u32 %v1051, 65535
  %v1068 = vand.u32 %v1052, 65535
  %v1069 = vand.u32 %v1053, 65535
  %v1070 = vand.u32 %v1054, 65535
  %v1071 = vand.u32 %v1055, 65535
  %v1072 = vand.u32 %v1056, 65535
  %v1073 = vand.u32 %v1057, 65535
  %v1074 = vand.u32 %v1058, 65535
  %v1075 = vand.u32 %v1059, 65535
  %v1076 = vand.u32 %v1060, 65535
  %v1077 = vand.u32 %v1061, 65535
  %v1078 = vxor.u32 %v1030, %v1062
  %v1079 = vxor.u32 %v1031, %v1063
  %v1080 = vxor.u32 %v1032, %v1064
  %v1081 = vxor.u32 %v1033, %v1065
  %v1082 = vxor.u32 %v1034, %v1066
  %v1083 = vxor.u32 %v1035, %v1067
  %v1084 = vxor.u32 %v1036, %v1068
  %v1085 = vxor.u32 %v1037, %v1069
  %v1086 = vxor.u32 %v1038, %v1070
  %v1087 = vxor.u32 %v1039, %v1071
  %v1088 = vxor.u32 %v1040, %v1072
  %v1089 = vxor.u32 %v1041, %v1073
  %v1090 = vxor.u32 %v1042, %v1074
  %v1091 = vxor.u32 %v1043, %v1075
  %v1092 = vxor.u32 %v1044, %v1076
  %v1093 = vxor.u32 %v1045, %v1077
  %v1094 = vmul.u32 %v1078, 2146121005
  %v1095 = vmul.u32 %v1079, 2146121005
  %v1096 = vmul.u32 %v1080, 2146121005
  %v1097 = vmul.u32 %v1081, 2146121005
  %v1098 = vmul.u32 %v1082, 2146121005
  %v1099 = vmul.u32 %v1083, 2146121005
  %v1100 = vmul.u32 %v1084, 2146121005
  %v1101 = vmul.u32 %v1085, 2146121005
  %v1102 = vmul.u32 %v1086, 2146121005
  %v1103 = vmul.u32 %v1087, 2146121005
  %v1104 = vmul.u32 %v1088, 2146121005
  %v1105 = vmul.u32 %v1089, 2146121005
  %v1106 = vmul.u32 %v1090, 2146121005
  %v1107 = vmul.u32 %v1091, 2146121005
  %v1108 = vmul.u32 %v1092, 2146121005
  %v1109 = vmul.u32 %v1093, 2146121005
  %v1110 = vshra.s32 %v1094, 15
  %v1111 = vshra.s32 %v1095, 15
  %v1112 = vshra.s32 %v1096, 15
  %v1113 = vshra.s32 %v1097, 15
  %v1114 = vshra.s32 %v1098, 15
  %v1115 = vshra.s32 %v1099, 15
  %v1116 = vshra.s32 %v1100, 15
  %v1117 = vshra.s32 %v1101, 15
  %v1118 = vshra.s32 %v1102, 15
  %v1119 = vshra.s32 %v1103, 15
  %v1120 = vshra.s32 %v1104, 15
  %v1121 = vshra.s32 %v1105, 15
  %v1122 = vshra.s32 %v1106, 15
  %v1123 = vshra.s32 %v1107, 15
  %v1124 = vshra.s32 %v1108, 15
  %v1125 = vshra.s32 %v1109, 15
  %v1126 = vand.u32 %v1110, 131071
  %v1127 = vand.u32 %v1111, 131071
  %v1128 = vand.u32 %v1112, 131071
  %v1129 = vand.u32 %v1113, 131071
  %v1130 = vand.u32 %v1114, 131071
  %v1131 = vand.u32 %v1115, 131071
  %v1132 = vand.u32 %v1116, 131071
  %v1133 = vand.u32 %v1117, 131071
  %v1134 = vand.u32 %v1118, 131071
  %v1135 = vand.u32 %v1119, 131071
  %v1136 = vand.u32 %v1120, 131071
  %v1137 = vand.u32 %v1121, 131071
  %v1138 = vand.u32 %v1122, 131071
  %v1139 = vand.u32 %v1123, 131071
  %v1140 = vand.u32 %v1124, 131071
  %v1141 = vand.u32 %v1125, 131071
  %v1142 = vxor.u32 %v1094, %v1126
  %v1143 = vxor.u32 %v1095, %v1127
  %v1144 = vxor.u32 %v1096, %v1128
  %v1145 = vxor.u32 %v1097, %v1129
  %v1146 = vxor.u32 %v1098, %v1130
  %v1147 = vxor.u32 %v1099, %v1131
  %v1148 = vxor.u32 %v1100, %v1132
  %v1149 = vxor.u32 %v1101, %v1133
  %v1150 = vxor.u32 %v1102, %v1134
  %v1151 = vxor.u32 %v1103, %v1135
  %v1152 = vxor.u32 %v1104, %v1136
  %v1153 = vxor.u32 %v1105, %v1137
  %v1154 = vxor.u32 %v1106, %v1138
  %v1155 = vxor.u32 %v1107, %v1139
  %v1156 = vxor.u32 %v1108, %v1140
  %v1157 = vxor.u32 %v1109, %v1141
  %v1158 = vmul.u32 %v1142, 2221713035
  %v1159 = vmul.u32 %v1143, 2221713035
  %v1160 = vmul.u32 %v1144, 2221713035
  %v1161 = vmul.u32 %v1145, 2221713035
  %v1162 = vmul.u32 %v1146, 2221713035
  %v1163 = vmul.u32 %v1147, 2221713035
  %v1164 = vmul.u32 %v1148, 2221713035
  %v1165 = vmul.u32 %v1149, 2221713035
  %v1166 = vmul.u32 %v1150, 2221713035
  %v1167 = vmul.u32 %v1151, 2221713035
  %v1168 = vmul.u32 %v1152, 2221713035
  %v1169 = vmul.u32 %v1153, 2221713035
  %v1170 = vmul.u32 %v1154, 2221713035
  %v1171 = vmul.u32 %v1155, 2221713035
  %v1172 = vmul.u32 %v1156, 2221713035
  %v1173 = vmul.u32 %v1157, 2221713035
  %v1174 = vshra.s32 %v1158, 16
  %v1175 = vshra.s32 %v1159, 16
  %v1176 = vshra.s32 %v1160, 16
  %v1177 = vshra.s32 %v1161, 16
  %v1178 = vshra.s32 %v1162, 16
  %v1179 = vshra.s32 %v1163, 16
  %v1180 = vshra.s32 %v1164, 16
  %v1181 = vshra.s32 %v1165, 16
  %v1182 = vshra.s32 %v1166, 16
  %v1183 = vshra.s32 %v1167, 16
  %v1184 = vshra.s32 %v1168, 16
  %v1185 = vshra.s32 %v1169, 16
  %v1186 = vshra.s32 %v1170, 16
  %v1187 = vshra.s32 %v1171, 16
  %v1188 = vshra.s32 %v1172, 16
  %v1189 = vshra.s32 %v1173, 16
  %v1190 = vand.u32 %v1174, 65535
  %v1191 = vand.u32 %v1175, 65535
  %v1192 = vand.u32 %v1176, 65535
  %v1193 = vand.u32 %v1177, 65535
  %v1194 = vand.u32 %v1178, 65535
  %v1195 = vand.u32 %v1179, 65535
  %v1196 = vand.u32 %v1180, 65535
  %v1197 = vand.u32 %v1181, 65535
  %v1198 = vand.u32 %v1182, 65535
  %v1199 = vand.u32 %v1183, 65535
  %v1200 = vand.u32 %v1184, 65535
  %v1201 = vand.u32 %v1185, 65535
  %v1202 = vand.u32 %v1186, 65535
  %v1203 = vand.u32 %v1187, 65535
  %v1204 = vand.u32 %v1188, 65535
  %v1205 = vand.u32 %v1189, 65535
  %v1206 = vxor.u32 %v1158, %v1190
  %v1207 = vxor.u32 %v1159, %v1191
  %v1208 = vxor.u32 %v1160, %v1192
  %v1209 = vxor.u32 %v1161, %v1193
  %v1210 = vxor.u32 %v1162, %v1194
  %v1211 = vxor.u32 %v1163, %v1195
  %v1212 = vxor.u32 %v1164, %v1196
  %v1213 = vxor.u32 %v1165, %v1197
  %v1214 = vxor.u32 %v1166, %v1198
  %v1215 = vxor.u32 %v1167, %v1199
  %v1216 = vxor.u32 %v1168, %v1200
  %v1217 = vxor.u32 %v1169, %v1201
  %v1218 = vxor.u32 %v1170, %v1202
  %v1219 = vxor.u32 %v1171, %v1203
  %v1220 = vxor.u32 %v1172, %v1204
  %v1221 = vxor.u32 %v1173, %v1205
  %v1222 = vshra.s32 %v1206, 8
  %v1223 = vshra.s32 %v1207, 8
  %v1224 = vshra.s32 %v1208, 8
  %v1225 = vshra.s32 %v1209, 8
  %v1226 = vshra.s32 %v1210, 8
  %v1227 = vshra.s32 %v1211, 8
  %v1228 = vshra.s32 %v1212, 8
  %v1229 = vshra.s32 %v1213, 8
  %v1230 = vshra.s32 %v1214, 8
  %v1231 = vshra.s32 %v1215, 8
  %v1232 = vshra.s32 %v1216, 8
  %v1233 = vshra.s32 %v1217, 8
  %v1234 = vshra.s32 %v1218, 8
  %v1235 = vshra.s32 %v1219, 8
  %v1236 = vshra.s32 %v1220, 8
  %v1237 = vshra.s32 %v1221, 8
  %v1238 = vand.u32 %v1222, 16777215
  %v1239 = vand.u32 %v1223, 16777215
  %v1240 = vand.u32 %v1224, 16777215
  %v1241 = vand.u32 %v1225, 16777215
  %v1242 = vand.u32 %v1226, 16777215
  %v1243 = vand.u32 %v1227, 16777215
  %v1244 = vand.u32 %v1228, 16777215
  %v1245 = vand.u32 %v1229, 16777215
  %v1246 = vand.u32 %v1230, 16777215
  %v1247 = vand.u32 %v1231, 16777215
  %v1248 = vand.u32 %v1232, 16777215
  %v1249 = vand.u32 %v1233, 16777215
  %v1250 = vand.u32 %v1234, 16777215
  %v1251 = vand.u32 %v1235, 16777215
  %v1252 = vand.u32 %v1236, 16777215
  %v1253 = vand.u32 %v1237, 16777215
  %vm1254 = vcmp.ge.s32.totalorder %v1238, 8388608
  %vm1255 = vcmp.ge.s32.totalorder %v1239, 8388608
  %vm1256 = vcmp.ge.s32.totalorder %v1240, 8388608
  %vm1257 = vcmp.ge.s32.totalorder %v1241, 8388608
  %vm1258 = vcmp.ge.s32.totalorder %v1242, 8388608
  %vm1259 = vcmp.ge.s32.totalorder %v1243, 8388608
  %vm1260 = vcmp.ge.s32.totalorder %v1244, 8388608
  %vm1261 = vcmp.ge.s32.totalorder %v1245, 8388608
  %vm1262 = vcmp.ge.s32.totalorder %v1246, 8388608
  %vm1263 = vcmp.ge.s32.totalorder %v1247, 8388608
  %vm1264 = vcmp.ge.s32.totalorder %v1248, 8388608
  %vm1265 = vcmp.ge.s32.totalorder %v1249, 8388608
  %vm1266 = vcmp.ge.s32.totalorder %v1250, 8388608
  %vm1267 = vcmp.ge.s32.totalorder %v1251, 8388608
  %vm1268 = vcmp.ge.s32.totalorder %v1252, 8388608
  %vm1269 = vcmp.ge.s32.totalorder %v1253, 8388608
  %v1270 = vmul.f32 %v968, 2.0
  %v1271 = vmul.f32 %v971, 2.0
  %v1272 = vmul.f32 %v976, 2.0
  %v1273 = vmul.f32 %v979, 2.0
  %v1274 = vmul.f32 %v984, 2.0
  %v1275 = vmul.f32 %v987, 2.0
  %v1276 = vmul.f32 %v992, 2.0
  %v1277 = vmul.f32 %v995, 2.0
  %v1278 = vmul.f32 %v1000, 2.0
  %v1279 = vmul.f32 %v1003, 2.0
  %v1280 = vmul.f32 %v1008, 2.0
  %v1281 = vmul.f32 %v1011, 2.0
  %v1282 = vmul.f32 %v1016, 2.0
  %v1283 = vmul.f32 %v1019, 2.0
  %v1284 = vmul.f32 %v1024, 2.0
  %v1285 = vmul.f32 %v1027, 2.0
  %v1286 = vsel %vm1254, %v1270, 0.0
  %v1287 = vsel %vm1255, %v1271, 0.0
  %v1288 = vsel %vm1256, %v1272, 0.0
  %v1289 = vsel %vm1257, %v1273, 0.0
  %v1290 = vsel %vm1258, %v1274, 0.0
  %v1291 = vsel %vm1259, %v1275, 0.0
  %v1292 = vsel %vm1260, %v1276, 0.0
  %v1293 = vsel %vm1261, %v1277, 0.0
  %v1294 = vsel %vm1262, %v1278, 0.0
  %v1295 = vsel %vm1263, %v1279, 0.0
  %v1296 = vsel %vm1264, %v1280, 0.0
  %v1297 = vsel %vm1265, %v1281, 0.0
  %v1298 = vsel %vm1266, %v1282, 0.0
  %v1299 = vsel %vm1267, %v1283, 0.0
  %v1300 = vsel %vm1268, %v1284, 0.0
  %v1301 = vsel %vm1269, %v1285, 0.0
  %v1302 = vpack.c.bf16 %v1287, %v1286
  %v1303 = vpack.c.bf16 %v1289, %v1288
  %v1304 = vpack.c.bf16 %v1291, %v1290
  %v1305 = vpack.c.bf16 %v1293, %v1292
  %v1306 = vpack.c.bf16 %v1295, %v1294
  %v1307 = vpack.c.bf16 %v1297, %v1296
  %v1308 = vpack.c.bf16 %v1299, %v1298
  %v1309 = vpack.c.bf16 %v1301, %v1300
  %v1310 = vld [vmem:[%s6] sm:$0xf]
  %v1311 = vld [vmem:[%s6 + $0x4] sm:$0xf]
  %v1312 = vld [vmem:[%s6 + $0x8] sm:$0xf]
  %v1313 = vld [vmem:[%s6 + $0xc] sm:$0xf]
  %v1314 = vld [vmem:[%s6 + $0x10] sm:$0xf]
  %v1315 = vld [vmem:[%s6 + $0x14] sm:$0xf]
  %v1316 = vld [vmem:[%s6 + $0x18] sm:$0xf]
  %v1317 = vld [vmem:[%s6 + $0x1c] sm:$0xf]
  %v1318 = vld [vmem:[%s6 + $0x20] sm:$0xf]
  %v1319 = vld [vmem:[%s6 + $0x24] sm:$0xf]
  %v1320 = vld [vmem:[%s6 + $0x28] sm:$0xf]
  %v1321 = vld [vmem:[%s6 + $0x2c] sm:$0xf]
  %v1322 = vld [vmem:[%s6 + $0x30] sm:$0xf]
  %v1323 = vld [vmem:[%s6 + $0x34] sm:$0xf]
  %v1324 = vld [vmem:[%s6 + $0x38] sm:$0xf]
  %v1325 = vld [vmem:[%s6 + $0x3c] sm:$0xf]
  %v1326 = vld [vmem:[%s7] sm:$0x1]
  %v1328 = vlaneseq
  %v1329 = vshrl.u32 %v1328, 7
  %v1330 = vsub.s32 0, %v1329
  %v1331 = vrot.slane %v1326, %v1330
  %v1349 = vunpack.c.l.b16 %v1310
  %v1350 = vunpack.c.l.b16 %v1311
  %v1351 = vunpack.c.l.b16 %v1312
  %v1352 = vunpack.c.l.b16 %v1313
  %v1353 = vunpack.c.l.b16 %v1314
  %v1354 = vunpack.c.l.b16 %v1315
  %v1355 = vunpack.c.l.b16 %v1316
  %v1356 = vunpack.c.l.b16 %v1317
  %v1357 = vunpack.c.l.b16 %v1318
  %v1358 = vunpack.c.l.b16 %v1319
  %v1359 = vunpack.c.l.b16 %v1320
  %v1360 = vunpack.c.l.b16 %v1321
  %v1361 = vunpack.c.l.b16 %v1322
  %v1362 = vunpack.c.l.b16 %v1323
  %v1363 = vunpack.c.l.b16 %v1324
  %v1364 = vunpack.c.l.b16 %v1325
  %v1365 = vpack.c.b16 %v1350, %v1349
  %v1366 = vpack.c.b16 %v1352, %v1351
  %v1367 = vpack.c.b16 %v1354, %v1353
  %v1368 = vpack.c.b16 %v1356, %v1355
  %v1369 = vpack.c.b16 %v1358, %v1357
  %v1370 = vpack.c.b16 %v1360, %v1359
  %v1371 = vpack.c.b16 %v1362, %v1361
  %v1372 = vpack.c.b16 %v1364, %v1363
  %1381 = vmatprep.subr.bf16.mxu0 0
  %1382 = vmatpush1.bf16.msra.mxu0 %v1365
  %1383 = vmatprep.subr.bf16.mxu0 0
  %1384 = vmatpush1.bf16.msra.mxu0 %v1366
  %1385 = vmatprep.subr.bf16.mxu0 0
  %1386 = vmatpush1.bf16.msra.mxu0 %v1367
  %1387 = vmatprep.subr.bf16.mxu0 0
  %1388 = vmatpush1.bf16.msra.mxu0 %v1368
  %1389 = vmatprep.subr.bf16.mxu0 0
  %1390 = vmatpush1.bf16.msra.mxu0 %v1369
  %1391 = vmatprep.subr.bf16.mxu0 0
  %1392 = vmatpush1.bf16.msra.mxu0 %v1370
  %1393 = vmatprep.subr.bf16.mxu0 0
  %1394 = vmatpush1.bf16.msra.mxu0 %v1371
  %1395 = vmatprep.subr.bf16.mxu0 0
  %1396 = vmatpush1.bf16.msra.mxu0 %v1372
  %1397 = vmatprep.subr.bf16.mxu0 0
  %1398 = vmatpush1.bf16.msra.mxu0 0
  %1399 = vmatprep.subr.bf16.mxu0 0
  %1400 = vmatpush1.bf16.msra.mxu0 0
  %1401 = vmatprep.subr.bf16.mxu0 0
  %1402 = vmatpush1.bf16.msra.mxu0 0
  %1403 = vmatprep.subr.bf16.mxu0 0
  %1404 = vmatpush1.bf16.msra.mxu0 0
  %1405 = vmatprep.subr.bf16.mxu0 0
  %1406 = vmatpush1.bf16.msra.mxu0 0
  %1407 = vmatprep.subr.bf16.mxu0 0
  %1408 = vmatpush1.bf16.msra.mxu0 0
  %1409 = vmatprep.subr.bf16.mxu0 0
  %1410 = vmatpush1.bf16.msra.mxu0 0
  %1411 = vmatprep.subr.bf16.mxu0 0
  %1412 = vmatpush1.bf16.msra.mxu0 0
  %1413 = vmatprep.mubr.bf16.mxu0 0
  %1414 = vmatmul.mubr.bf16.gmra.mrb[0].mxu0 %v1302
  %v1415 = vpop.f32.mrb[0].mxu0
  %v1416 = vadd.f32 %v1331, %v1415
  %v1417 = vpop.f32.mrb[0].mxu0
  %v1418 = vpop.f32.mrb[0].mxu0
  %v1419 = vadd.f32 %v1331, %v1418
  %v1420 = vpop.f32.mrb[0].mxu0
  %1421 = vmatprep.mubr.bf16.mxu0 0
  %1422 = vmatmul.mubr.bf16.gmra.mrb[0].mxu0 %v1303
  %v1423 = vpop.f32.mrb[0].mxu0
  %v1424 = vadd.f32 %v1331, %v1423
  %v1425 = vpop.f32.mrb[0].mxu0
  %v1426 = vpop.f32.mrb[0].mxu0
  %v1427 = vadd.f32 %v1331, %v1426
  %v1428 = vpop.f32.mrb[0].mxu0
  %1429 = vmatprep.mubr.bf16.mxu0 0
  %1430 = vmatmul.mubr.bf16.gmra.mrb[0].mxu0 %v1304
  %v1431 = vpop.f32.mrb[0].mxu0
  %v1432 = vadd.f32 %v1331, %v1431
  %v1433 = vpop.f32.mrb[0].mxu0
  %v1434 = vpop.f32.mrb[0].mxu0
  %v1435 = vadd.f32 %v1331, %v1434
  %v1436 = vpop.f32.mrb[0].mxu0
  %1437 = vmatprep.mubr.bf16.mxu0 0
  %1438 = vmatmul.mubr.bf16.gmra.mrb[0].mxu0 %v1305
  %v1439 = vpop.f32.mrb[0].mxu0
  %v1440 = vadd.f32 %v1331, %v1439
  %v1441 = vpop.f32.mrb[0].mxu0
  %v1442 = vpop.f32.mrb[0].mxu0
  %v1443 = vadd.f32 %v1331, %v1442
  %v1444 = vpop.f32.mrb[0].mxu0
  %1445 = vmatprep.mubr.bf16.mxu0 0
  %1446 = vmatmul.mubr.bf16.gmra.mrb[0].mxu0 %v1306
  %v1447 = vpop.f32.mrb[0].mxu0
  %v1448 = vadd.f32 %v1331, %v1447
  %v1449 = vpop.f32.mrb[0].mxu0
  %v1450 = vpop.f32.mrb[0].mxu0
  %v1451 = vadd.f32 %v1331, %v1450
  %v1452 = vpop.f32.mrb[0].mxu0
  %1453 = vmatprep.mubr.bf16.mxu0 0
  %1454 = vmatmul.mubr.bf16.gmra.mrb[0].mxu0 %v1307
  %v1455 = vpop.f32.mrb[0].mxu0
  %v1456 = vadd.f32 %v1331, %v1455
  %v1457 = vpop.f32.mrb[0].mxu0
  %v1458 = vpop.f32.mrb[0].mxu0
  %v1459 = vadd.f32 %v1331, %v1458
  %v1460 = vpop.f32.mrb[0].mxu0
  %1461 = vmatprep.mubr.bf16.mxu0 0
  %1462 = vmatmul.mubr.bf16.gmra.mrb[0].mxu0 %v1308
  %v1463 = vpop.f32.mrb[0].mxu0
  %v1464 = vadd.f32 %v1331, %v1463
  %v1465 = vpop.f32.mrb[0].mxu0
  %v1466 = vpop.f32.mrb[0].mxu0
  %v1467 = vadd.f32 %v1331, %v1466
  %v1468 = vpop.f32.mrb[0].mxu0
  %1469 = vmatprep.mubr.bf16.mxu0 0
  %1470 = vmatmul.mubr.bf16.gmra.mrb[0].mxu0 %v1309
  %v1471 = vpop.f32.mrb[0].mxu0
  %v1472 = vadd.f32 %v1331, %v1471
  %v1473 = vpop.f32.mrb[0].mxu0
  %v1474 = vpop.f32.mrb[0].mxu0
  %v1475 = vadd.f32 %v1331, %v1474
  %v1476 = vpop.f32.mrb[0].mxu0
  %1477 = vdwg.mxu0
  %1478 = vst [vmem:[%s8] sm:$0xff] %v1416
  %1479 = vst [vmem:[%s8 + $0x8] sm:$0xff] %v1419
  %1480 = vst [vmem:[%s8 + $0x10] sm:$0xff] %v1424
  %1481 = vst [vmem:[%s8 + $0x18] sm:$0xff] %v1427
  %1482 = vst [vmem:[%s8 + $0x20] sm:$0xff] %v1432
  %1483 = vst [vmem:[%s8 + $0x28] sm:$0xff] %v1435
  %1484 = vst [vmem:[%s8 + $0x30] sm:$0xff] %v1440
  %1485 = vst [vmem:[%s8 + $0x38] sm:$0xff] %v1443
  %1486 = vst [vmem:[%s8 + $0x40] sm:$0xff] %v1448
  %1487 = vst [vmem:[%s8 + $0x48] sm:$0xff] %v1451
  %1488 = vst [vmem:[%s8 + $0x50] sm:$0xff] %v1456
  %1489 = vst [vmem:[%s8 + $0x58] sm:$0xff] %v1459
  %1490 = vst [vmem:[%s8 + $0x60] sm:$0xff] %v1464
  %1491 = vst [vmem:[%s8 + $0x68] sm:$0xff] %v1467
  %1492 = vst [vmem:[%s8 + $0x70] sm:$0xff] %v1472
  %1493 = vst [vmem:[%s8 + $0x78] sm:$0xff] %v1475
  // Predicated region
  $region30: #{dropout_mlp.1} parent=0 // pred_check
    _
  $region31: #{dropout_mlp.1} parent=0 // pred_check_branch
    %1495 = sbr.rel (0) target = $region33
  $region32: #{dropout_mlp.1} parent=0 // pred_region
    _
  $region33: #{dropout_mlp.1} parent=0 // pred_fallthru
    _
  // Predicated region
  $region34: #{dropout_mlp.1} parent=0 // pred_check
    _
  $region35: #{dropout_mlp.1} parent=0 // pred_check_branch
    %1497 = sbr.rel (0) target = $region37
  $region36: #{dropout_mlp.1} parent=0 // pred_region
    _
  $region37: #{dropout_mlp.1} parent=0 // pred_fallthru
    _

</llo_original>
